<compile_context>
chip_gen: v6e
topology: v6e:2x2x1
jax: 0.10.0
libtpu: 0.0.40
codegen_flags: <defaults>
</compile_context>

<pallas_src>
import jax
import jax.numpy as jnp
from jax import lax
from jax.experimental import pallas as pl
from jax.experimental.pallas import tpu as pltpu

KERNEL_SIZE = 5
PAD = (KERNEL_SIZE - 1) // 2
REPEATS = 3

_VMEM_TARGET_BYTES = 24 * 1024 * 1024   # double-buffered in + 3x out blocks / step
_VMEM_LIMIT_BYTES = 40 * 1024 * 1024    # scoped VMEM allowance (< v7x 64 MiB phys)
_MIN_GRID_STEPS = 8                     # keep v7x's 2 TCs + the DMA pipeline fed
_MIN_STEP_BYTES = 512 * 1024            # amortize the ~0.35us per-step overhead
_VREG_BUDGET = 16                       # vregs per live array inside one strip


def _round_up(a, m):
    return (a + m - 1) // m * m


def _pad_value(dtype):
    """Most-negative finite value of `dtype`.

    Identical to -inf padding for max pooling (every 5x5 window contains at
    least one real pixel), and valid for ints / float formats without inf.
    """
    dtype = jnp.dtype(dtype)
    if jnp.issubdtype(dtype, jnp.floating):
        return float(jnp.finfo(dtype).min)
    return int(jnp.iinfo(dtype).min)


def _sliding_max5_circular(a, axis):
    """Centered 5-tap sliding max along `axis`, computed circularly.

    `a` must carry >= 4 'lowest'-valued entries at the end of `axis`; the roll
    wrap-around then reproduces MaxPool2d's -inf border exactly (every 5-wide
    circular window sees each real element at most once and the pad value
    elsewhere).  Rolls run on the XLU, maxes on the VPU - both have slack in
    this memory-bound kernel.
    """
    n = a.shape[axis]

    def fwd(v, d):  # fwd(v, d)[..., i, ...] = v[..., (i + d) % n, ...]
        return pltpu.roll(v, shift=(-d) % n, axis=axis)

    m2 = jnp.maximum(a, fwd(a, 1))       # taps {0, 1}
    m4 = jnp.maximum(m2, fwd(m2, 2))     # taps {0..3}
    s = jnp.maximum(m4, fwd(a, 4))       # taps {0..4}
    return pltpu.roll(s, shift=PAD, axis=axis)   # recenter: out[i] = s[i - 2]


def spp_kernel(x_ref, o_ref, pad_ref):
    # x_ref:   (1, TC, H, W)             NCHW input tile (W on lanes, H sublanes)
    # o_ref:   (1, REPEATS, TC, H, W)    one pooled tile per repeat (cat along C)
    # pad_ref: (CS, H+4, W+4)            per-strip scratch; tails hold `low`
    _, tc, H, W = x_ref.shape
    cs, Hq, Wq = pad_ref.shape
    low = _pad_value(x_ref.dtype)

    # "Lowest"-value tails only (rows >= H for all cols; cols >= W for rows < H).
    # Written once per grid step; the interior is refreshed per channel strip
    # below and the tails are never overwritten.
    pad_ref[:, H:Hq, :] = jnp.full((cs, Hq - H, Wq), low, x_ref.dtype)
    pad_ref[:, 0:H, W:Wq] = jnp.full((cs, H, Wq - W), low, x_ref.dtype)

    # Hoisted border mask: repeats >= 1 re-pad the previous result in vregs
    # (one select) instead of round-tripping through the scratch.
    rows = lax.broadcasted_iota(jnp.int32, (Hq, Wq), 0)
    cols = lax.broadcasted_iota(jnp.int32, (Hq, Wq), 1)
    interior = jnp.broadcast_to(((rows < H) & (cols < W))[None], (cs, Hq, Wq))

    def strip_body(s, carry):
        c0 = pl.multiple_of(s * cs, cs)
        # Repeat 0: build the padded plane through the scratch (aligned interior
        # store at offset (0, 0); tails already hold `low`).
        pad_ref[:, 0:H, 0:W] = x_ref[0, pl.ds(c0, cs), :, :]
        q = pad_ref[...]                                   # (cs, Hq, Wq)
        for r in range(REPEATS):
            y = _sliding_max5_circular(q, axis=2)          # W pass (lane rolls)
            y = _sliding_max5_circular(y, axis=1)          # H pass (sublane rolls)
            o_ref[0, r, pl.ds(c0, cs), :, :] = y[:, 0:H, 0:W]
            if r + 1 < REPEATS:                            # chained pooling
                q = jnp.where(interior, y, low)            # re-pad in vregs
        return carry

    lax.fori_loop(0, tc // cs, strip_body, 0)


def _pick_tiles(N, C, H, W, dtype):
    """Channel tile `tc` per grid step and channel strip `cs` per inner iter.

    Accounts for Mosaic's (8, 128) VMEM tiling padding of (H, W) planes and for
    BlockSpec double buffering of the input block + REPEATS output blocks.
    """
    item = jnp.dtype(dtype).itemsize
    plane_vmem = _round_up(H, 8) * _round_up(W, 128) * item
    per_chan = 2 * (1 + REPEATS) * plane_vmem          # dbl-buffered in + 3x out
    divisors = [d for d in range(1, C + 1) if C % d == 0]
    fitting = [d for d in divisors if d * per_chan <= _VMEM_TARGET_BYTES] or [1]
    tc = max(fitting)

    # Prefer more grid steps (pipeline overlap, v7x dual TensorCores) as long as
    # each step still moves enough HBM bytes to amortize the step overhead.
    def step_bytes(d):
        return (1 + REPEATS) * d * H * W * item

    while N * (C // tc) < _MIN_GRID_STEPS:
        smaller = [d for d in fitting if d < tc and step_bytes(d) >= _MIN_STEP_BYTES]
        if not smaller:
            break
        tc = max(smaller)

    # Strip size: bound the live vreg set of the in-register pooling math.
    # TODO(synk): for very large H*W (e.g. 160x160) a single channel plane no
    # longer fits the vreg budget; an H-strip + 6-pixel halo path would be
    # needed to avoid residual spills there.
    vregs_per_chan = ((_round_up(H + 2 * PAD, 8) // 8)
                      * (_round_up(W + 2 * PAD, 128) // 128))
    cs = max(1, min(tc, _VREG_BUDGET // max(1, vregs_per_chan)))
    while tc % cs:
        cs -= 1
    return tc, cs


@jax.jit
def spp_block(x):
    """SPPBlock(kernel_size=5, repeats=3, pool='max') forward pass."""
    # TODO(synk): only the default pool='max' branch is implemented; the 'avg'
    # variant (zero padding + count_include_pad division) is not covered.
    N, C, H, W = x.shape
    tc, cs = _pick_tiles(N, C, H, W, x.dtype)
    n_ct = C // tc

    cost = pl.CostEstimate(
        flops=6 * REPEATS * N * C * H * W,                     # maxes (VPU)
        transcendentals=0,
        bytes_accessed=(1 + REPEATS) * N * C * H * W * x.dtype.itemsize,
    )

    # Put the larger parallel axis first so megacore/v7x has something to split.
    if n_ct >= N:
        grid = (n_ct, N)
        in_specs = [pl.BlockSpec((1, tc, H, W), lambda j, n: (n, j, 0, 0))]
        out_specs = pl.BlockSpec((1, REPEATS, tc, H, W),
                                 lambda j, n: (n, 0, j, 0, 0))
    else:
        grid = (N, n_ct)
        in_specs = [pl.BlockSpec((1, tc, H, W), lambda n, j: (n, j, 0, 0))]
        out_specs = pl.BlockSpec((1, REPEATS, tc, H, W),
                                 lambda n, j: (n, 0, j, 0, 0))

    out = pl.pallas_call(
        spp_kernel,
        out_shape=jax.ShapeDtypeStruct((N, REPEATS, C, H, W), x.dtype),
        grid=grid,
        in_specs=in_specs,
        out_specs=out_specs,
        scratch_shapes=[pltpu.VMEM((cs, H + 2 * PAD, W + 2 * PAD), x.dtype)],
        compiler_params=pltpu.CompilerParams(
            dimension_semantics=("parallel", "parallel"),
            vmem_limit_bytes=_VMEM_LIMIT_BYTES),
        cost_estimate=cost,
    )(x)

    # (N, REPEATS, C, H, W) -> (N, REPEATS*C, H, W): contiguous, i.e. a free
    # reshape that matches torch.cat([p1, p2, p3], dim=1).
    return out.reshape(N, REPEATS * C, H, W)


def spp_block_ref(x):
    """Pure-JAX reference matching torch.nn.MaxPool2d(5, 1, 2) chained 3x."""
    outs = []
    cur = x
    for _ in range(REPEATS):
        cur = lax.reduce_window(
            cur, -jnp.inf, lax.max,
            (1, 1, KERNEL_SIZE, KERNEL_SIZE),
            (1, 1, 1, 1),
            [(0, 0), (0, 0), (PAD, PAD), (PAD, PAD)],
        )
        outs.append(cur)
    return jnp.concatenate(outs, axis=1)


if __name__ == "__main__":
    key = jax.random.PRNGKey(0)
    x = jax.random.normal(key, (2, 4, 16, 16), dtype=jnp.float32)

    out = jax.block_until_ready(spp_block(x))
    ref = spp_block_ref(x)

    assert out.shape == (2, REPEATS * 4, 16, 16), out.shape
    assert out.dtype == x.dtype
    assert jnp.allclose(out, ref, atol=1e-6), "mismatch vs reference"

    print("KERNEL_OK")
</pallas_src>

<mosaic_0001>
module attributes {stable_mosaic.version = 11 : i64} {
  func.func @spp_kernel(%arg0: i32, %arg1: i32, %arg2: memref<1x4x16x16xf32, #tpu.memory_space<vmem>>, %arg3: memref<1x3x4x16x16xf32, #tpu.memory_space<vmem>>, %arg4: memref<4x20x20xf32, #tpu.memory_space<vmem>>) attributes {dimension_semantics = [#tpu.dimension_semantics<parallel>, #tpu.dimension_semantics<parallel>], iteration_bounds = array<i64: 2, 1>, scalar_prefetch = 0 : i64, scratch_operands = 1 : i64, tpu.core_type = #tpu.core_type<tc>, window_params = [{transform_indices = @transform_0, window_bounds = array<i64: 1, 4, 16, 16>}, {transform_indices = @transform_1, window_bounds = array<i64: 1, 3, 4, 16, 16>}]} {
    %cst = arith.constant -3.40282347E+38 : f32
    %0 = vector.broadcast %cst : f32 to vector<4x4x20xf32>
    %c0 = arith.constant 0 : index
    %c16 = arith.constant 16 : index
    %c0_0 = arith.constant 0 : index
    %1 = vector.load %arg4[%c0, %c16, %c0_0] : memref<4x20x20xf32, #tpu.memory_space<vmem>>, vector<4x4x20xf32>
    tpu.vector_store %arg4[%c0, %c16, %c0_0], %0 {strides = array<i32>} : memref<4x20x20xf32, #tpu.memory_space<vmem>>, vector<4x4x20xf32>,
    %cst_1 = arith.constant -3.40282347E+38 : f32
    %2 = vector.broadcast %cst_1 : f32 to vector<4x16x4xf32>
    %c0_2 = arith.constant 0 : index
    %c0_3 = arith.constant 0 : index
    %c16_4 = arith.constant 16 : index
    %3 = vector.load %arg4[%c0_2, %c0_3, %c16_4] : memref<4x20x20xf32, #tpu.memory_space<vmem>>, vector<4x16x4xf32>
    tpu.vector_store %arg4[%c0_2, %c0_3, %c16_4], %2 {strides = array<i32>} : memref<4x20x20xf32, #tpu.memory_space<vmem>>, vector<4x16x4xf32>,
    %4 = tpu.iota {dimensions = array<i32: 0>} : vector<20x20xi32>
    %5 = tpu.iota {dimensions = array<i32: 1>} : vector<20x20xi32>
    %c16_i32 = arith.constant 16 : i32
    %6 = vector.broadcast %c16_i32 : i32 to vector<20x20xi32>
    %7 = arith.cmpi slt, %4, %6 : vector<20x20xi32>
    %c16_i32_5 = arith.constant 16 : i32
    %8 = vector.broadcast %c16_i32_5 : i32 to vector<20x20xi32>
    %9 = arith.cmpi slt, %5, %8 : vector<20x20xi32>
    %10 = arith.andi %7, %9 : vector<20x20xi1>
    %11 = vector.shape_cast %10 : vector<20x20xi1> to vector<1x20x20xi1>
    %12 = vector.shape_cast %11 : vector<1x20x20xi1> to vector<1x20x20xi1>
    %13 = vector.broadcast %12 : vector<1x20x20xi1> to vector<4x20x20xi1>
    %c0_i32 = arith.constant 0 : i32
    %c4_i32 = arith.constant 4 : i32
    %14 = arith.muli %c0_i32, %c4_i32 : i32
    %15 = tpu.assume_multiple %14, 4 : i32
    %c0_6 = arith.constant 0 : index
    %16 = arith.index_cast %15 : i32 to index
    %c0_7 = arith.constant 0 : index
    %c0_8 = arith.constant 0 : index
    %17 = vector.load %arg2[%c0_6, %16, %c0_7, %c0_8] : memref<1x4x16x16xf32, #tpu.memory_space<vmem>>, vector<1x4x16x16xf32>
    %18 = vector.shape_cast %17 : vector<1x4x16x16xf32> to vector<4x16x16xf32>
    %c0_9 = arith.constant 0 : index
    %c0_10 = arith.constant 0 : index
    %c0_11 = arith.constant 0 : index
    %19 = vector.load %arg4[%c0_9, %c0_10, %c0_11] : memref<4x20x20xf32, #tpu.memory_space<vmem>>, vector<4x16x16xf32>
    tpu.vector_store %arg4[%c0_9, %c0_10, %c0_11], %18 {strides = array<i32>} : memref<4x20x20xf32, #tpu.memory_space<vmem>>, vector<4x16x16xf32>,
    %c0_12 = arith.constant 0 : index
    %c0_13 = arith.constant 0 : index
    %c0_14 = arith.constant 0 : index
    %20 = vector.load %arg4[%c0_12, %c0_13, %c0_14] : memref<4x20x20xf32, #tpu.memory_space<vmem>>, vector<4x20x20xf32>
    %c19_i32 = arith.constant 19 : i32
    %21 = tpu.dynamic_rotate %20 by %c19_i32 dim 2 : vector<4x20x20xf32>, i32 -> vector<4x20x20xf32>
    %22 = arith.maximumf %20, %21 : vector<4x20x20xf32>
    %c18_i32 = arith.constant 18 : i32
    %23 = tpu.dynamic_rotate %22 by %c18_i32 dim 2 : vector<4x20x20xf32>, i32 -> vector<4x20x20xf32>
    %24 = arith.maximumf %22, %23 : vector<4x20x20xf32>
    %c16_i32_15 = arith.constant 16 : i32
    %25 = tpu.dynamic_rotate %20 by %c16_i32_15 dim 2 : vector<4x20x20xf32>, i32 -> vector<4x20x20xf32>
    %26 = arith.maximumf %24, %25 : vector<4x20x20xf32>
    %c2_i32 = arith.constant 2 : i32
    %27 = tpu.dynamic_rotate %26 by %c2_i32 dim 2 : vector<4x20x20xf32>, i32 -> vector<4x20x20xf32>
    %c19_i32_16 = arith.constant 19 : i32
    %28 = tpu.dynamic_rotate %27 by %c19_i32_16 dim 1 : vector<4x20x20xf32>, i32 -> vector<4x20x20xf32>
    %29 = arith.maximumf %27, %28 : vector<4x20x20xf32>
    %c18_i32_17 = arith.constant 18 : i32
    %30 = tpu.dynamic_rotate %29 by %c18_i32_17 dim 1 : vector<4x20x20xf32>, i32 -> vector<4x20x20xf32>
    %31 = arith.maximumf %29, %30 : vector<4x20x20xf32>
    %c16_i32_18 = arith.constant 16 : i32
    %32 = tpu.dynamic_rotate %27 by %c16_i32_18 dim 1 : vector<4x20x20xf32>, i32 -> vector<4x20x20xf32>
    %33 = arith.maximumf %31, %32 : vector<4x20x20xf32>
    %c2_i32_19 = arith.constant 2 : i32
    %34 = tpu.dynamic_rotate %33 by %c2_i32_19 dim 1 : vector<4x20x20xf32>, i32 -> vector<4x20x20xf32>
    %35 = vector.extract_strided_slice %34 {offsets = [0, 0, 0], sizes = [4, 16, 16], strides = [1, 1, 1]} : vector<4x20x20xf32> to vector<4x16x16xf32>
    %c0_20 = arith.constant 0 : index
    %c0_21 = arith.constant 0 : index
    %36 = arith.index_cast %15 : i32 to index
    %c0_22 = arith.constant 0 : index
    %c0_23 = arith.constant 0 : index
    %37 = vector.load %arg3[%c0_20, %c0_21, %36, %c0_22, %c0_23] : memref<1x3x4x16x16xf32, #tpu.memory_space<vmem>>, vector<1x1x4x16x16xf32>
    %38 = vector.shape_cast %37 : vector<1x1x4x16x16xf32> to vector<4x16x16xf32>
    %39 = vector.shape_cast %35 : vector<4x16x16xf32> to vector<1x1x4x16x16xf32>
    tpu.vector_store %arg3[%c0_20, %c0_21, %36, %c0_22, %c0_23], %39 {strides = array<i32>} : memref<1x3x4x16x16xf32, #tpu.memory_space<vmem>>, vector<1x1x4x16x16xf32>,
    %cst_24 = arith.constant -3.40282347E+38 : f32
    %40 = vector.broadcast %cst_24 : f32 to vector<4x20x20xf32>
    %41 = arith.select %13, %34, %40 : vector<4x20x20xi1>, vector<4x20x20xf32>
    %c19_i32_25 = arith.constant 19 : i32
    %42 = tpu.dynamic_rotate %41 by %c19_i32_25 dim 2 : vector<4x20x20xf32>, i32 -> vector<4x20x20xf32>
    %43 = arith.maximumf %41, %42 : vector<4x20x20xf32>
    %c18_i32_26 = arith.constant 18 : i32
    %44 = tpu.dynamic_rotate %43 by %c18_i32_26 dim 2 : vector<4x20x20xf32>, i32 -> vector<4x20x20xf32>
    %45 = arith.maximumf %43, %44 : vector<4x20x20xf32>
    %c16_i32_27 = arith.constant 16 : i32
    %46 = tpu.dynamic_rotate %41 by %c16_i32_27 dim 2 : vector<4x20x20xf32>, i32 -> vector<4x20x20xf32>
    %47 = arith.maximumf %45, %46 : vector<4x20x20xf32>
    %c2_i32_28 = arith.constant 2 : i32
    %48 = tpu.dynamic_rotate %47 by %c2_i32_28 dim 2 : vector<4x20x20xf32>, i32 -> vector<4x20x20xf32>
    %c19_i32_29 = arith.constant 19 : i32
    %49 = tpu.dynamic_rotate %48 by %c19_i32_29 dim 1 : vector<4x20x20xf32>, i32 -> vector<4x20x20xf32>
    %50 = arith.maximumf %48, %49 : vector<4x20x20xf32>
    %c18_i32_30 = arith.constant 18 : i32
    %51 = tpu.dynamic_rotate %50 by %c18_i32_30 dim 1 : vector<4x20x20xf32>, i32 -> vector<4x20x20xf32>
    %52 = arith.maximumf %50, %51 : vector<4x20x20xf32>
    %c16_i32_31 = arith.constant 16 : i32
    %53 = tpu.dynamic_rotate %48 by %c16_i32_31 dim 1 : vector<4x20x20xf32>, i32 -> vector<4x20x20xf32>
    %54 = arith.maximumf %52, %53 : vector<4x20x20xf32>
    %c2_i32_32 = arith.constant 2 : i32
    %55 = tpu.dynamic_rotate %54 by %c2_i32_32 dim 1 : vector<4x20x20xf32>, i32 -> vector<4x20x20xf32>
    %56 = vector.extract_strided_slice %55 {offsets = [0, 0, 0], sizes = [4, 16, 16], strides = [1, 1, 1]} : vector<4x20x20xf32> to vector<4x16x16xf32>
    %c0_33 = arith.constant 0 : index
    %c1 = arith.constant 1 : index
    %57 = arith.index_cast %15 : i32 to index
    %c0_34 = arith.constant 0 : index
    %c0_35 = arith.constant 0 : index
    %58 = vector.load %arg3[%c0_33, %c1, %57, %c0_34, %c0_35] : memref<1x3x4x16x16xf32, #tpu.memory_space<vmem>>, vector<1x1x4x16x16xf32>
    %59 = vector.shape_cast %58 : vector<1x1x4x16x16xf32> to vector<4x16x16xf32>
    %60 = vector.shape_cast %56 : vector<4x16x16xf32> to vector<1x1x4x16x16xf32>
    tpu.vector_store %arg3[%c0_33, %c1, %57, %c0_34, %c0_35], %60 {strides = array<i32>} : memref<1x3x4x16x16xf32, #tpu.memory_space<vmem>>, vector<1x1x4x16x16xf32>,
    %cst_36 = arith.constant -3.40282347E+38 : f32
    %61 = vector.broadcast %cst_36 : f32 to vector<4x20x20xf32>
    %62 = arith.select %13, %55, %61 : vector<4x20x20xi1>, vector<4x20x20xf32>
    %c19_i32_37 = arith.constant 19 : i32
    %63 = tpu.dynamic_rotate %62 by %c19_i32_37 dim 2 : vector<4x20x20xf32>, i32 -> vector<4x20x20xf32>
    %64 = arith.maximumf %62, %63 : vector<4x20x20xf32>
    %c18_i32_38 = arith.constant 18 : i32
    %65 = tpu.dynamic_rotate %64 by %c18_i32_38 dim 2 : vector<4x20x20xf32>, i32 -> vector<4x20x20xf32>
    %66 = arith.maximumf %64, %65 : vector<4x20x20xf32>
    %c16_i32_39 = arith.constant 16 : i32
    %67 = tpu.dynamic_rotate %62 by %c16_i32_39 dim 2 : vector<4x20x20xf32>, i32 -> vector<4x20x20xf32>
    %68 = arith.maximumf %66, %67 : vector<4x20x20xf32>
    %c2_i32_40 = arith.constant 2 : i32
    %69 = tpu.dynamic_rotate %68 by %c2_i32_40 dim 2 : vector<4x20x20xf32>, i32 -> vector<4x20x20xf32>
    %c19_i32_41 = arith.constant 19 : i32
    %70 = tpu.dynamic_rotate %69 by %c19_i32_41 dim 1 : vector<4x20x20xf32>, i32 -> vector<4x20x20xf32>
    %71 = arith.maximumf %69, %70 : vector<4x20x20xf32>
    %c18_i32_42 = arith.constant 18 : i32
    %72 = tpu.dynamic_rotate %71 by %c18_i32_42 dim 1 : vector<4x20x20xf32>, i32 -> vector<4x20x20xf32>
    %73 = arith.maximumf %71, %72 : vector<4x20x20xf32>
    %c16_i32_43 = arith.constant 16 : i32
    %74 = tpu.dynamic_rotate %69 by %c16_i32_43 dim 1 : vector<4x20x20xf32>, i32 -> vector<4x20x20xf32>
    %75 = arith.maximumf %73, %74 : vector<4x20x20xf32>
    %c2_i32_44 = arith.constant 2 : i32
    %76 = tpu.dynamic_rotate %75 by %c2_i32_44 dim 1 : vector<4x20x20xf32>, i32 -> vector<4x20x20xf32>
    %77 = vector.extract_strided_slice %76 {offsets = [0, 0, 0], sizes = [4, 16, 16], strides = [1, 1, 1]} : vector<4x20x20xf32> to vector<4x16x16xf32>
    %c0_45 = arith.constant 0 : index
    %c2 = arith.constant 2 : index
    %78 = arith.index_cast %15 : i32 to index
    %c0_46 = arith.constant 0 : index
    %c0_47 = arith.constant 0 : index
    %79 = vector.load %arg3[%c0_45, %c2, %78, %c0_46, %c0_47] : memref<1x3x4x16x16xf32, #tpu.memory_space<vmem>>, vector<1x1x4x16x16xf32>
    %80 = vector.shape_cast %79 : vector<1x1x4x16x16xf32> to vector<4x16x16xf32>
    %81 = vector.shape_cast %77 : vector<4x16x16xf32> to vector<1x1x4x16x16xf32>
    tpu.vector_store %arg3[%c0_45, %c2, %78, %c0_46, %c0_47], %81 {strides = array<i32>} : memref<1x3x4x16x16xf32, #tpu.memory_space<vmem>>, vector<1x1x4x16x16xf32>,
    %c1_i32 = arith.constant 1 : i32
    return
  }
  func.func @transform_0(%arg0: i32, %arg1: i32) -> (i32, i32, i32, i32) {
    %c0_i32 = arith.constant 0 : i32
    %c0_i32_0 = arith.constant 0 : i32
    %c0_i32_1 = arith.constant 0 : i32
    return %arg0, %arg1, %c0_i32, %c0_i32_0 : i32, i32, i32, i32
  }
  func.func @transform_1(%arg0: i32, %arg1: i32) -> (i32, i32, i32, i32, i32) {
    %c0_i32 = arith.constant 0 : i32
    %c0_i32_0 = arith.constant 0 : i32
    %c0_i32_1 = arith.constant 0 : i32
    %c0_i32_2 = arith.constant 0 : i32
    return %arg0, %c0_i32, %arg1, %c0_i32_0, %c0_i32_1 : i32, i32, i32, i32, i32
  }
}

</mosaic_0001>

<llo_original>
// kernel: spp_block.1
$region0: #{spp_block.1}
  #allocation0 [shape = 'u32[]', space=smem, size = 0x4, offset = 0x4, fixed_abs, tag = 'smem constant byte address 0x4 - core index']
  #allocation1 [shape = 'u32[144,128]{1,0:T(1,128)}', space=vmem, size = 0x12000, scoped, tag = 'internal scratch']
  #allocation2 [shape = 'f32[4,20,20]{2,1,0:T(8,128)}', space=vmem, size = 0xc000, scoped, tag = 'scratch operand']
  %s0 = inlined_call_operand.hbm [shape: f32[2,4,16,16], index: 0, kind: input, shape index: {}]
  %s1 = inlined_call_operand.hbm [shape: f32[2,3,4,16,16], index: 1, kind: output, shape index: {}]
  %s2 = sld [smem:[#allocation0]]
  $region41: #{spp_block.1} parent=0
    _
  %s4 = ssub.s32 1, %s2
  %s5 = scalar_select 0, %s4, %s2
  $region1: #{spp_block.1} parent=0
    #allocation3 [shape = 'u8[65536]{0}', space=vmem, size = 0x10000, scoped, tag = 'input window, operand 0']
    #allocation4 [shape = 's32[2]{0}', space=sflag, size = 0x8, scoped, tag = 'scoped memory for spp_block.1']
    #allocation5 [shape = 's32[2]{0}', space=sflag, size = 0x8, scoped, tag = 'scoped memory for spp_block.1']
    #allocation6 [shape = 'u8[196608]{0}', space=vmem, size = 0x30000, scoped, tag = 'output window, operand 0']
    %6 = vsyncpa [#allocation4], 0
    %s7 = scalar_lea.sflag [#allocation4], 1
    %8 = vsyncpa %s7, 0
    %9 = vsyncpa [#allocation5], 0
    %s10 = scalar_lea.sflag [#allocation5], 1
    %11 = vsyncpa %s10, 0
    loop: start=0, step=1, limit=4
    $region2: #{spp_block.1} parent=1 // loop_pre_header
      _
    $region3: #{spp_block.1} parent=1 // loop_header
      %s13 = sphi 0, %s17
      %p14 = scmp.ge.s32.totalorder %s13, 4
      %s20 = sphi 0, %s32
      %s21 = sphi 0, %s28
      %s22 = sphi 0, %s20
      %s23 = sphi 0, %s21
      %s24 = sphi 0, %s22
      %s25 = sphi 0, %s23
      %s37 = sphi 0, %s39
      %s40 = sphi 0, %s37
      %s41 = sphi 0, %s40
      %s57 = sphi 0, %s41
      %s65 = sphi 0, %s67
      %s68 = sphi 0, %s65
      %s69 = sphi 0, %s68
      %s85 = sphi 0, %s69
    $region4: #{spp_block.1} parent=1 // loop_header_branch
      %16 = sbr.rel (%p14) target = $region8
    $region5: #{spp_block.1} parent=1 // loop_body
      %s18 = ssub.s32 %s13, 1
      %s19 = ssub.s32 %s13, 2
      %s26 = sadd.s32 1, %s21
      %p27 = scmp.ge.s32.totalorder %s26, 1
      %s28 = scalar_select %p27, 0, %s26
      %s29 = sadd.s32 1, %s20
      %s30 = scalar_select %p27, %s29, %s20
      %p31 = scmp.ge.s32.totalorder %s30, 2
      %s32 = scalar_select %p31, 0, %s30
      %s33 = ssub.s32 %s20, %s32
      %s34 = ssub.s32 %s21, %s28
      %s35 = sor.u32 %s33, %s34
      %p36 = scmp.eq.s32.totalorder %s35, 0
      %s38 = sadd.s32 %s37, 1
      %s39 = scalar_select %p36, %s37, %s38
      %p42 = pneg %p36
      %p43 = scmp.eq.s32.totalorder %s13, 1
      %p44 = por %p42, %p43
      %p45 = scmp.ne.s32.totalorder %s37, %s40
      %p46 = scmp.eq.s32.totalorder %s13, 0
      %p47 = por %p45, %p46
      %p48 = scmp.ne.s32.totalorder %s37, %s40
      %p49 = scmp.eq.s32.totalorder %s18, 1
      %p50 = por %p48, %p49
      %p51 = scmp.ne.s32.totalorder %s40, %s41
      %p52 = scmp.eq.s32.totalorder %s18, 0
      %p53 = por %p51, %p52
      %p54 = scmp.ne.s32.totalorder %s40, %s41
      %p55 = scmp.eq.s32.totalorder %s19, 1
      %p56 = por %p54, %p55
      %p58 = scmp.ne.s32.totalorder %s41, %s57
      %p59 = scmp.eq.s32.totalorder %s19, 0
      %p60 = por %p58, %p59
      %s61 = ssub.s32 %s20, %s32
      %s62 = ssub.s32 %s21, %s28
      %s63 = sor.u32 %s61, %s62
      %p64 = scmp.eq.s32.totalorder %s63, 0
      %s66 = sadd.s32 %s65, 1
      %s67 = scalar_select %p64, %s65, %s66
      %p70 = pneg %p64
      %p71 = scmp.eq.s32.totalorder %s13, 1
      %p72 = por %p70, %p71
      %p73 = scmp.ne.s32.totalorder %s65, %s68
      %p74 = scmp.eq.s32.totalorder %s13, 0
      %p75 = por %p73, %p74
      %p76 = scmp.ne.s32.totalorder %s65, %s68
      %p77 = scmp.eq.s32.totalorder %s18, 1
      %p78 = por %p76, %p77
      %p79 = scmp.ne.s32.totalorder %s68, %s69
      %p80 = scmp.eq.s32.totalorder %s18, 0
      %p81 = por %p79, %p80
      %p82 = scmp.ne.s32.totalorder %s68, %s69
      %p83 = scmp.eq.s32.totalorder %s19, 1
      %p84 = por %p82, %p83
      %p86 = scmp.ne.s32.totalorder %s69, %s85
      %p87 = scmp.eq.s32.totalorder %s19, 0
      %p88 = por %p86, %p87
      %p89 = scmp.le.s32.totalorder 1, %s13
      %p90 = scmp.lt.s32.totalorder %s13, 3
      %p91 = pnand %p89, %p90
      %p92 = pneg %p91
      // Predicated region
      $region9: #{spp_block.1} parent=5 // pred_check
        _
      $region10: #{spp_block.1} parent=5 // pred_check_branch
        %94 = sbr.rel (%p91) target = $region12
      $region11: #{spp_block.1} parent=5 // pred_region
        %s95 = ssub.s32 %s13, 1
      $region12: #{spp_block.1} parent=5 // pred_fallthru
        _
      %p96 = scmp.lt.s32.totalorder %s13, 2
      // Predicated region
      $region13: #{spp_block.1} parent=5 // pred_check
        %p97 = pneg %p96
      $region14: #{spp_block.1} parent=5 // pred_check_branch
        %99 = sbr.rel (%p97) target = $region16
      $region15: #{spp_block.1} parent=5 // pred_region
        // Predicated region
        $region17: #{spp_block.1} parent=15 // pred_check
          %p100 = pneg %p47
        $region18: #{spp_block.1} parent=15 // pred_check_branch
          %102 = sbr.rel (%p100) target = $region20
        $region19: #{spp_block.1} parent=15 // pred_region
          %s103 = sand.u32 %s37, 1
          %s104 = scalar_lea.sflag [#allocation4], %s103
          %s105 = sand.u32 %s37, 1
          %s106 = smul.addr %s105, 64
          %s107 = scalar_lea.vmem [#allocation3], %s106
          %s108 = smul.u32 4, %s21
          %s110 = ssub.s32 1024, 1024
          %111 = vsyncadd %s104, %s110
          %s112 = smul.addr %s108, 2
          %s113 = smul.addr %s20, 8
          %s114 = sadd.s32 %s112, %s113
          %s115 = smul.addr %s114, 128
          %s116 = scalar_lea.hbm %s0, %s115
          %s117 = sshll.u32 %s107, 4
          %s118 = int_to_ptr.vmem [resolvable:$true] %s117
          %123 = dma.hbm_to_vmem [thread:$0]  %s116, 1024, %s118, %s104, 128, 128, 8
        $region20: #{spp_block.1} parent=15 // pred_fallthru
          _
      $region16: #{spp_block.1} parent=5 // pred_fallthru
        _
      %p124 = scmp.le.s32.totalorder 1, %s13
      %p125 = scmp.lt.s32.totalorder %s13, 3
      %p126 = pnand %p124, %p125
      %p127 = pneg %p126
      // Predicated region
      $region21: #{spp_block.1} parent=5 // pred_check
        _
      $region22: #{spp_block.1} parent=5 // pred_check_branch
        %129 = sbr.rel (%p126) target = $region24
      $region23: #{spp_block.1} parent=5 // pred_region
        %s130 = ssub.s32 %s13, 1
        %s131 = sand.u32 %s40, 1
        %s132 = scalar_lea.sflag [#allocation4], %s131
        %s133 = sand.u32 %s40, 1
        %s134 = smul.addr %s133, 64
        %s135 = scalar_lea.vmem [#allocation3], %s134
        // Predicated region
        $region25: #{spp_block.1} parent=23 // pred_check
          %p136 = pneg %p53
        $region26: #{spp_block.1} parent=23 // pred_check_branch
          %138 = sbr.rel (%p136) target = $region28
        $region27: #{spp_block.1} parent=23 // pred_region
          %139 = dma.done %s132, 1024
        $region28: #{spp_block.1} parent=23 // pred_fallthru
          _
        %s140 = sand.u32 %s40, 1
        %s141 = scalar_lea.sflag [#allocation4], %s140
        %s142 = sand.u32 %s40, 1
        %s143 = smul.addr %s142, 64
        %s144 = scalar_lea.vmem [#allocation3], %s143
        %p145 = pneg %p53
        %p146 = pneg %p50
        %p147 = pneg %p81
        %p148 = pneg %p78
        %s149 = sand.u32 %s68, 1
        %s150 = scalar_lea.sflag [#allocation5], %s149
        %s151 = sand.u32 %s68, 1
        %s152 = smul.addr %s151, 192
        %s153 = scalar_lea.vmem [#allocation6], %s152
        %s154 = smul.u32 4, %s23
        %s155 = smul.u32 4, %s23
        %vm156 = vcmask 158720
        %157 = vst.msk [vmem:[#allocation2 + $0x10] sm:$0xf] %vm156, -3.4028235e+38
        %158 = vst.msk [vmem:[#allocation2 + $0x28] sm:$0xf] %vm156, -3.4028235e+38
        %159 = vst.msk [vmem:[#allocation2 + $0x40] sm:$0xf] %vm156, -3.4028235e+38
        %160 = vst.msk [vmem:[#allocation2 + $0x58] sm:$0xf] %vm156, -3.4028235e+38
        %vm161 = vcmask 162944
        %162 = vst.msk [vmem:[#allocation2] sm:$0xff] %vm161, -3.4028235e+38
        %163 = vst.msk [vmem:[#allocation2 + $0x8] sm:$0xff] %vm161, -3.4028235e+38
        %164 = vst.msk [vmem:[#allocation2 + $0x18] sm:$0xff] %vm161, -3.4028235e+38
        %165 = vst.msk [vmem:[#allocation2 + $0x20] sm:$0xff] %vm161, -3.4028235e+38
        %166 = vst.msk [vmem:[#allocation2 + $0x30] sm:$0xff] %vm161, -3.4028235e+38
        %167 = vst.msk [vmem:[#allocation2 + $0x38] sm:$0xff] %vm161, -3.4028235e+38
        %168 = vst.msk [vmem:[#allocation2 + $0x48] sm:$0xff] %vm161, -3.4028235e+38
        %169 = vst.msk [vmem:[#allocation2 + $0x50] sm:$0xff] %vm161, -3.4028235e+38
        %v170 = vlaneseq
        %v171 = vshrl.u32 %v170, 7
        %v172 = vadd.s32 %v171, 8
        %v173 = vadd.s32 %v171, 16
        %v174 = vlaneseq
        %v175 = vand.u32 %v174, 127
        %vm176 = vcmp.lt.s32.totalorder %v171, 16
        %vm177 = vcmp.lt.s32.totalorder %v172, 16
        %vm178 = vcmp.lt.s32.totalorder %v173, 16
        %vm179 = vcmp.lt.s32.totalorder %v175, 16
        %vm180 = vmand %vm176, %vm179
        %vm181 = vmand %vm177, %vm179
        %vm182 = vmand %vm178, %vm179
        %v183 = vsel %vm180, 1, 0
        %v184 = vsel %vm181, 1, 0
        %v185 = vsel %vm182, 1, 0
        %vm186 = vcmp.eq.s32.totalorder %v183, 1
        %vm187 = vcmp.eq.s32.totalorder %v184, 1
        %vm188 = vcmp.eq.s32.totalorder %v185, 1
        %s189 = smul.u32 0, 16
        %s190 = scalar_lea.vmem %s135, %s189 [#allocation3]
        %v191 = vld [vmem:[%s190] sm:$0xff]
        %v192 = vld [vmem:[%s190 + $0x8] sm:$0xff]
        %v193 = vld [vmem:[%s190 + $0x10] sm:$0xff]
        %v194 = vld [vmem:[%s190 + $0x18] sm:$0xff]
        %v195 = vld [vmem:[%s190 + $0x20] sm:$0xff]
        %v196 = vld [vmem:[%s190 + $0x28] sm:$0xff]
        %v197 = vld [vmem:[%s190 + $0x30] sm:$0xff]
        %v198 = vld [vmem:[%s190 + $0x38] sm:$0xff]
        %vm199 = vcmask 130048
        %200 = vst.msk [vmem:[#allocation2] sm:$0xff] %vm199, %v191
        %201 = vst.msk [vmem:[#allocation2 + $0x8] sm:$0xff] %vm199, %v192
        %202 = vst.msk [vmem:[#allocation2 + $0x18] sm:$0xff] %vm199, %v193
        %203 = vst.msk [vmem:[#allocation2 + $0x20] sm:$0xff] %vm199, %v194
        %204 = vst.msk [vmem:[#allocation2 + $0x30] sm:$0xff] %vm199, %v195
        %205 = vst.msk [vmem:[#allocation2 + $0x38] sm:$0xff] %vm199, %v196
        %206 = vst.msk [vmem:[#allocation2 + $0x48] sm:$0xff] %vm199, %v197
        %207 = vst.msk [vmem:[#allocation2 + $0x50] sm:$0xff] %vm199, %v198
        %v208 = vld [vmem:[#allocation2] sm:$0xff]
        %v209 = vld [vmem:[#allocation2 + $0x8] sm:$0xff]
        %v210 = vld [vmem:[#allocation2 + $0x10] sm:$0xf]
        %v211 = vld [vmem:[#allocation2 + $0x18] sm:$0xff]
        %v212 = vld [vmem:[#allocation2 + $0x20] sm:$0xff]
        %v213 = vld [vmem:[#allocation2 + $0x28] sm:$0xf]
        %v214 = vld [vmem:[#allocation2 + $0x30] sm:$0xff]
        %v215 = vld [vmem:[#allocation2 + $0x38] sm:$0xff]
        %v216 = vld [vmem:[#allocation2 + $0x40] sm:$0xf]
        %v217 = vld [vmem:[#allocation2 + $0x48] sm:$0xff]
        %v218 = vld [vmem:[#allocation2 + $0x50] sm:$0xff]
        %v219 = vld [vmem:[#allocation2 + $0x58] sm:$0xf]
        %vm220 = vcmask 1047712
        %221 = vrot.lane.b32.xlu0 %v208, 20
        %v222 = vpop.permute.xlu0 %221
        %v223 = vsel %vm220, %v222, %v208
        %224 = vrot.lane.b32.xlu0 %v209, 20
        %v225 = vpop.permute.xlu0 %224
        %v226 = vsel %vm220, %v225, %v209
        %227 = vrot.lane.b32.xlu0 %v210, 20
        %v228 = vpop.permute.xlu0 %227
        %v229 = vsel %vm220, %v228, %v210
        %230 = vrot.lane.b32.xlu0 %v211, 20
        %v231 = vpop.permute.xlu0 %230
        %v232 = vsel %vm220, %v231, %v211
        %233 = vrot.lane.b32.xlu0 %v212, 20
        %v234 = vpop.permute.xlu0 %233
        %v235 = vsel %vm220, %v234, %v212
        %236 = vrot.lane.b32.xlu0 %v213, 20
        %v237 = vpop.permute.xlu0 %236
        %v238 = vsel %vm220, %v237, %v213
        %239 = vrot.lane.b32.xlu0 %v214, 20
        %v240 = vpop.permute.xlu0 %239
        %v241 = vsel %vm220, %v240, %v214
        %242 = vrot.lane.b32.xlu0 %v215, 20
        %v243 = vpop.permute.xlu0 %242
        %v244 = vsel %vm220, %v243, %v215
        %245 = vrot.lane.b32.xlu0 %v216, 20
        %v246 = vpop.permute.xlu0 %245
        %v247 = vsel %vm220, %v246, %v216
        %248 = vrot.lane.b32.xlu0 %v217, 20
        %v249 = vpop.permute.xlu0 %248
        %v250 = vsel %vm220, %v249, %v217
        %251 = vrot.lane.b32.xlu0 %v218, 20
        %v252 = vpop.permute.xlu0 %251
        %v253 = vsel %vm220, %v252, %v218
        %254 = vrot.lane.b32.xlu0 %v219, 20
        %v255 = vpop.permute.xlu0 %254
        %v256 = vsel %vm220, %v255, %v219
        %257 = vrot.lane.b32.xlu0 %v223, 20
        %v258 = vpop.permute.xlu0 %257
        %259 = vrot.lane.b32.xlu0 %v226, 20
        %v260 = vpop.permute.xlu0 %259
        %261 = vrot.lane.b32.xlu0 %v229, 20
        %v262 = vpop.permute.xlu0 %261
        %263 = vrot.lane.b32.xlu0 %v232, 20
        %v264 = vpop.permute.xlu0 %263
        %265 = vrot.lane.b32.xlu0 %v235, 20
        %v266 = vpop.permute.xlu0 %265
        %267 = vrot.lane.b32.xlu0 %v238, 20
        %v268 = vpop.permute.xlu0 %267
        %269 = vrot.lane.b32.xlu0 %v241, 20
        %v270 = vpop.permute.xlu0 %269
        %271 = vrot.lane.b32.xlu0 %v244, 20
        %v272 = vpop.permute.xlu0 %271
        %273 = vrot.lane.b32.xlu0 %v247, 20
        %v274 = vpop.permute.xlu0 %273
        %275 = vrot.lane.b32.xlu0 %v250, 20
        %v276 = vpop.permute.xlu0 %275
        %277 = vrot.lane.b32.xlu0 %v253, 20
        %v278 = vpop.permute.xlu0 %277
        %279 = vrot.lane.b32.xlu0 %v256, 20
        %v280 = vpop.permute.xlu0 %279
        %v281 = vsel %vm220, %v258, %v208
        %v282 = vsel %vm220, %v260, %v209
        %v283 = vsel %vm220, %v262, %v210
        %v284 = vsel %vm220, %v264, %v211
        %v285 = vsel %vm220, %v266, %v212
        %v286 = vsel %vm220, %v268, %v213
        %v287 = vsel %vm220, %v270, %v214
        %v288 = vsel %vm220, %v272, %v215
        %v289 = vsel %vm220, %v274, %v216
        %v290 = vsel %vm220, %v276, %v217
        %v291 = vsel %vm220, %v278, %v218
        %v292 = vsel %vm220, %v280, %v219
        %305 = vrot.lane.b32.xlu0 %v281, 127
        %v306 = vpop.permute.xlu0 %305
        %307 = vrot.lane.b32.xlu0 %v282, 127
        %v308 = vpop.permute.xlu0 %307
        %309 = vrot.lane.b32.xlu0 %v283, 127
        %v310 = vpop.permute.xlu0 %309
        %311 = vrot.lane.b32.xlu0 %v284, 127
        %v312 = vpop.permute.xlu0 %311
        %313 = vrot.lane.b32.xlu0 %v285, 127
        %v314 = vpop.permute.xlu0 %313
        %315 = vrot.lane.b32.xlu0 %v286, 127
        %v316 = vpop.permute.xlu0 %315
        %317 = vrot.lane.b32.xlu0 %v287, 127
        %v318 = vpop.permute.xlu0 %317
        %319 = vrot.lane.b32.xlu0 %v288, 127
        %v320 = vpop.permute.xlu0 %319
        %321 = vrot.lane.b32.xlu0 %v289, 127
        %v322 = vpop.permute.xlu0 %321
        %323 = vrot.lane.b32.xlu0 %v290, 127
        %v324 = vpop.permute.xlu0 %323
        %325 = vrot.lane.b32.xlu0 %v291, 127
        %v326 = vpop.permute.xlu0 %325
        %327 = vrot.lane.b32.xlu0 %v292, 127
        %v328 = vpop.permute.xlu0 %327
        %v341 = vmax.f32 %v208, %v306
        %v342 = vmax.f32 %v209, %v308
        %v343 = vmax.f32 %v210, %v310
        %v344 = vmax.f32 %v211, %v312
        %v345 = vmax.f32 %v212, %v314
        %v346 = vmax.f32 %v213, %v316
        %v347 = vmax.f32 %v214, %v318
        %v348 = vmax.f32 %v215, %v320
        %v349 = vmax.f32 %v216, %v322
        %v350 = vmax.f32 %v217, %v324
        %v351 = vmax.f32 %v218, %v326
        %v352 = vmax.f32 %v219, %v328
        %353 = vrot.lane.b32.xlu0 %v341, 20
        %v354 = vpop.permute.xlu0 %353
        %v355 = vsel %vm220, %v354, %v341
        %356 = vrot.lane.b32.xlu0 %v342, 20
        %v357 = vpop.permute.xlu0 %356
        %v358 = vsel %vm220, %v357, %v342
        %359 = vrot.lane.b32.xlu0 %v343, 20
        %v360 = vpop.permute.xlu0 %359
        %v361 = vsel %vm220, %v360, %v343
        %362 = vrot.lane.b32.xlu0 %v344, 20
        %v363 = vpop.permute.xlu0 %362
        %v364 = vsel %vm220, %v363, %v344
        %365 = vrot.lane.b32.xlu0 %v345, 20
        %v366 = vpop.permute.xlu0 %365
        %v367 = vsel %vm220, %v366, %v345
        %368 = vrot.lane.b32.xlu0 %v346, 20
        %v369 = vpop.permute.xlu0 %368
        %v370 = vsel %vm220, %v369, %v346
        %371 = vrot.lane.b32.xlu0 %v347, 20
        %v372 = vpop.permute.xlu0 %371
        %v373 = vsel %vm220, %v372, %v347
        %374 = vrot.lane.b32.xlu0 %v348, 20
        %v375 = vpop.permute.xlu0 %374
        %v376 = vsel %vm220, %v375, %v348
        %377 = vrot.lane.b32.xlu0 %v349, 20
        %v378 = vpop.permute.xlu0 %377
        %v379 = vsel %vm220, %v378, %v349
        %380 = vrot.lane.b32.xlu0 %v350, 20
        %v381 = vpop.permute.xlu0 %380
        %v382 = vsel %vm220, %v381, %v350
        %383 = vrot.lane.b32.xlu0 %v351, 20
        %v384 = vpop.permute.xlu0 %383
        %v385 = vsel %vm220, %v384, %v351
        %386 = vrot.lane.b32.xlu0 %v352, 20
        %v387 = vpop.permute.xlu0 %386
        %v388 = vsel %vm220, %v387, %v352
        %389 = vrot.lane.b32.xlu0 %v355, 20
        %v390 = vpop.permute.xlu0 %389
        %391 = vrot.lane.b32.xlu0 %v358, 20
        %v392 = vpop.permute.xlu0 %391
        %393 = vrot.lane.b32.xlu0 %v361, 20
        %v394 = vpop.permute.xlu0 %393
        %395 = vrot.lane.b32.xlu0 %v364, 20
        %v396 = vpop.permute.xlu0 %395
        %397 = vrot.lane.b32.xlu0 %v367, 20
        %v398 = vpop.permute.xlu0 %397
        %399 = vrot.lane.b32.xlu0 %v370, 20
        %v400 = vpop.permute.xlu0 %399
        %401 = vrot.lane.b32.xlu0 %v373, 20
        %v402 = vpop.permute.xlu0 %401
        %403 = vrot.lane.b32.xlu0 %v376, 20
        %v404 = vpop.permute.xlu0 %403
        %405 = vrot.lane.b32.xlu0 %v379, 20
        %v406 = vpop.permute.xlu0 %405
        %407 = vrot.lane.b32.xlu0 %v382, 20
        %v408 = vpop.permute.xlu0 %407
        %409 = vrot.lane.b32.xlu0 %v385, 20
        %v410 = vpop.permute.xlu0 %409
        %411 = vrot.lane.b32.xlu0 %v388, 20
        %v412 = vpop.permute.xlu0 %411
        %v413 = vsel %vm220, %v390, %v341
        %v414 = vsel %vm220, %v392, %v342
        %v415 = vsel %vm220, %v394, %v343
        %v416 = vsel %vm220, %v396, %v344
        %v417 = vsel %vm220, %v398, %v345
        %v418 = vsel %vm220, %v400, %v346
        %v419 = vsel %vm220, %v402, %v347
        %v420 = vsel %vm220, %v404, %v348
        %v421 = vsel %vm220, %v406, %v349
        %v422 = vsel %vm220, %v408, %v350
        %v423 = vsel %vm220, %v410, %v351
        %v424 = vsel %vm220, %v412, %v352
        %437 = vrot.lane.b32.xlu0 %v413, 126
        %v438 = vpop.permute.xlu0 %437
        %439 = vrot.lane.b32.xlu0 %v414, 126
        %v440 = vpop.permute.xlu0 %439
        %441 = vrot.lane.b32.xlu0 %v415, 126
        %v442 = vpop.permute.xlu0 %441
        %443 = vrot.lane.b32.xlu0 %v416, 126
        %v444 = vpop.permute.xlu0 %443
        %445 = vrot.lane.b32.xlu0 %v417, 126
        %v446 = vpop.permute.xlu0 %445
        %447 = vrot.lane.b32.xlu0 %v418, 126
        %v448 = vpop.permute.xlu0 %447
        %449 = vrot.lane.b32.xlu0 %v419, 126
        %v450 = vpop.permute.xlu0 %449
        %451 = vrot.lane.b32.xlu0 %v420, 126
        %v452 = vpop.permute.xlu0 %451
        %453 = vrot.lane.b32.xlu0 %v421, 126
        %v454 = vpop.permute.xlu0 %453
        %455 = vrot.lane.b32.xlu0 %v422, 126
        %v456 = vpop.permute.xlu0 %455
        %457 = vrot.lane.b32.xlu0 %v423, 126
        %v458 = vpop.permute.xlu0 %457
        %459 = vrot.lane.b32.xlu0 %v424, 126
        %v460 = vpop.permute.xlu0 %459
        %v473 = vmax.f32 %v341, %v438
        %v474 = vmax.f32 %v342, %v440
        %v475 = vmax.f32 %v343, %v442
        %v476 = vmax.f32 %v344, %v444
        %v477 = vmax.f32 %v345, %v446
        %v478 = vmax.f32 %v346, %v448
        %v479 = vmax.f32 %v347, %v450
        %v480 = vmax.f32 %v348, %v452
        %v481 = vmax.f32 %v349, %v454
        %v482 = vmax.f32 %v350, %v456
        %v483 = vmax.f32 %v351, %v458
        %v484 = vmax.f32 %v352, %v460
        %485 = vrot.lane.b32.xlu0 %v281, 124
        %v486 = vpop.permute.xlu0 %485
        %487 = vrot.lane.b32.xlu0 %v282, 124
        %v488 = vpop.permute.xlu0 %487
        %489 = vrot.lane.b32.xlu0 %v283, 124
        %v490 = vpop.permute.xlu0 %489
        %491 = vrot.lane.b32.xlu0 %v284, 124
        %v492 = vpop.permute.xlu0 %491
        %493 = vrot.lane.b32.xlu0 %v285, 124
        %v494 = vpop.permute.xlu0 %493
        %495 = vrot.lane.b32.xlu0 %v286, 124
        %v496 = vpop.permute.xlu0 %495
        %497 = vrot.lane.b32.xlu0 %v287, 124
        %v498 = vpop.permute.xlu0 %497
        %499 = vrot.lane.b32.xlu0 %v288, 124
        %v500 = vpop.permute.xlu0 %499
        %501 = vrot.lane.b32.xlu0 %v289, 124
        %v502 = vpop.permute.xlu0 %501
        %503 = vrot.lane.b32.xlu0 %v290, 124
        %v504 = vpop.permute.xlu0 %503
        %505 = vrot.lane.b32.xlu0 %v291, 124
        %v506 = vpop.permute.xlu0 %505
        %507 = vrot.lane.b32.xlu0 %v292, 124
        %v508 = vpop.permute.xlu0 %507
        %v521 = vmax.f32 %v473, %v486
        %v522 = vmax.f32 %v474, %v488
        %v523 = vmax.f32 %v475, %v490
        %v524 = vmax.f32 %v476, %v492
        %v525 = vmax.f32 %v477, %v494
        %v526 = vmax.f32 %v478, %v496
        %v527 = vmax.f32 %v479, %v498
        %v528 = vmax.f32 %v480, %v500
        %v529 = vmax.f32 %v481, %v502
        %v530 = vmax.f32 %v482, %v504
        %v531 = vmax.f32 %v483, %v506
        %v532 = vmax.f32 %v484, %v508
        %533 = vrot.lane.b32.xlu0 %v521, 20
        %v534 = vpop.permute.xlu0 %533
        %v535 = vsel %vm220, %v534, %v521
        %536 = vrot.lane.b32.xlu0 %v522, 20
        %v537 = vpop.permute.xlu0 %536
        %v538 = vsel %vm220, %v537, %v522
        %539 = vrot.lane.b32.xlu0 %v523, 20
        %v540 = vpop.permute.xlu0 %539
        %v541 = vsel %vm220, %v540, %v523
        %542 = vrot.lane.b32.xlu0 %v524, 20
        %v543 = vpop.permute.xlu0 %542
        %v544 = vsel %vm220, %v543, %v524
        %545 = vrot.lane.b32.xlu0 %v525, 20
        %v546 = vpop.permute.xlu0 %545
        %v547 = vsel %vm220, %v546, %v525
        %548 = vrot.lane.b32.xlu0 %v526, 20
        %v549 = vpop.permute.xlu0 %548
        %v550 = vsel %vm220, %v549, %v526
        %551 = vrot.lane.b32.xlu0 %v527, 20
        %v552 = vpop.permute.xlu0 %551
        %v553 = vsel %vm220, %v552, %v527
        %554 = vrot.lane.b32.xlu0 %v528, 20
        %v555 = vpop.permute.xlu0 %554
        %v556 = vsel %vm220, %v555, %v528
        %557 = vrot.lane.b32.xlu0 %v529, 20
        %v558 = vpop.permute.xlu0 %557
        %v559 = vsel %vm220, %v558, %v529
        %560 = vrot.lane.b32.xlu0 %v530, 20
        %v561 = vpop.permute.xlu0 %560
        %v562 = vsel %vm220, %v561, %v530
        %563 = vrot.lane.b32.xlu0 %v531, 20
        %v564 = vpop.permute.xlu0 %563
        %v565 = vsel %vm220, %v564, %v531
        %566 = vrot.lane.b32.xlu0 %v532, 20
        %v567 = vpop.permute.xlu0 %566
        %v568 = vsel %vm220, %v567, %v532
        %569 = vrot.lane.b32.xlu0 %v535, 20
        %v570 = vpop.permute.xlu0 %569
        %571 = vrot.lane.b32.xlu0 %v538, 20
        %v572 = vpop.permute.xlu0 %571
        %573 = vrot.lane.b32.xlu0 %v541, 20
        %v574 = vpop.permute.xlu0 %573
        %575 = vrot.lane.b32.xlu0 %v544, 20
        %v576 = vpop.permute.xlu0 %575
        %577 = vrot.lane.b32.xlu0 %v547, 20
        %v578 = vpop.permute.xlu0 %577
        %579 = vrot.lane.b32.xlu0 %v550, 20
        %v580 = vpop.permute.xlu0 %579
        %581 = vrot.lane.b32.xlu0 %v553, 20
        %v582 = vpop.permute.xlu0 %581
        %583 = vrot.lane.b32.xlu0 %v556, 20
        %v584 = vpop.permute.xlu0 %583
        %585 = vrot.lane.b32.xlu0 %v559, 20
        %v586 = vpop.permute.xlu0 %585
        %587 = vrot.lane.b32.xlu0 %v562, 20
        %v588 = vpop.permute.xlu0 %587
        %589 = vrot.lane.b32.xlu0 %v565, 20
        %v590 = vpop.permute.xlu0 %589
        %591 = vrot.lane.b32.xlu0 %v568, 20
        %v592 = vpop.permute.xlu0 %591
        %v593 = vsel %vm220, %v570, %v521
        %v594 = vsel %vm220, %v572, %v522
        %v595 = vsel %vm220, %v574, %v523
        %v596 = vsel %vm220, %v576, %v524
        %v597 = vsel %vm220, %v578, %v525
        %v598 = vsel %vm220, %v580, %v526
        %v599 = vsel %vm220, %v582, %v527
        %v600 = vsel %vm220, %v584, %v528
        %v601 = vsel %vm220, %v586, %v529
        %v602 = vsel %vm220, %v588, %v530
        %v603 = vsel %vm220, %v590, %v531
        %v604 = vsel %vm220, %v592, %v532
        %617 = vrot.lane.b32.xlu0 %v593, 110
        %v618 = vpop.permute.xlu0 %617
        %619 = vrot.lane.b32.xlu0 %v594, 110
        %v620 = vpop.permute.xlu0 %619
        %621 = vrot.lane.b32.xlu0 %v595, 110
        %v622 = vpop.permute.xlu0 %621
        %623 = vrot.lane.b32.xlu0 %v596, 110
        %v624 = vpop.permute.xlu0 %623
        %625 = vrot.lane.b32.xlu0 %v597, 110
        %v626 = vpop.permute.xlu0 %625
        %627 = vrot.lane.b32.xlu0 %v598, 110
        %v628 = vpop.permute.xlu0 %627
        %629 = vrot.lane.b32.xlu0 %v599, 110
        %v630 = vpop.permute.xlu0 %629
        %631 = vrot.lane.b32.xlu0 %v600, 110
        %v632 = vpop.permute.xlu0 %631
        %633 = vrot.lane.b32.xlu0 %v601, 110
        %v634 = vpop.permute.xlu0 %633
        %635 = vrot.lane.b32.xlu0 %v602, 110
        %v636 = vpop.permute.xlu0 %635
        %637 = vrot.lane.b32.xlu0 %v603, 110
        %v638 = vpop.permute.xlu0 %637
        %639 = vrot.lane.b32.xlu0 %v604, 110
        %v640 = vpop.permute.xlu0 %639
        %vm649 = vcmask 1047556
        %v650 = vrot.slane %v618, 4
        %v651 = vrot.slane %v624, 4
        %v652 = vrot.slane %v630, 4
        %v653 = vrot.slane %v636, 4
        %v654 = vsel %vm649, %v650, %v622
        %v655 = vsel %vm649, %v651, %v628
        %v656 = vsel %vm649, %v652, %v634
        %v657 = vsel %vm649, %v653, %v640
        %vm662 = vcmask 1046528
        %v663 = vrot.slane %v618, 1
        %v664 = vrot.slane %v620, 1
        %v665 = vsel %vm662, %v663, %v664
        %v666 = vrot.slane %v654, 1
        %v667 = vsel %vm662, %v664, %v666
        %v668 = vrot.slane %v624, 1
        %v669 = vrot.slane %v626, 1
        %v670 = vsel %vm662, %v668, %v669
        %v671 = vrot.slane %v655, 1
        %v672 = vsel %vm662, %v669, %v671
        %v673 = vrot.slane %v630, 1
        %v674 = vrot.slane %v632, 1
        %v675 = vsel %vm662, %v673, %v674
        %v676 = vrot.slane %v656, 1
        %v677 = vsel %vm662, %v674, %v676
        %v678 = vrot.slane %v636, 1
        %v679 = vrot.slane %v638, 1
        %v680 = vsel %vm662, %v678, %v679
        %v681 = vrot.slane %v657, 1
        %v682 = vsel %vm662, %v679, %v681
        %683 = vrot.lane.b32.xlu0 %v665, 18
        %v684 = vpop.permute.xlu0 %683
        %685 = vrot.lane.b32.xlu0 %v667, 18
        %v686 = vpop.permute.xlu0 %685
        %687 = vrot.lane.b32.xlu0 %v666, 18
        %v688 = vpop.permute.xlu0 %687
        %689 = vrot.lane.b32.xlu0 %v670, 18
        %v690 = vpop.permute.xlu0 %689
        %691 = vrot.lane.b32.xlu0 %v672, 18
        %v692 = vpop.permute.xlu0 %691
        %693 = vrot.lane.b32.xlu0 %v671, 18
        %v694 = vpop.permute.xlu0 %693
        %695 = vrot.lane.b32.xlu0 %v675, 18
        %v696 = vpop.permute.xlu0 %695
        %697 = vrot.lane.b32.xlu0 %v677, 18
        %v698 = vpop.permute.xlu0 %697
        %699 = vrot.lane.b32.xlu0 %v676, 18
        %v700 = vpop.permute.xlu0 %699
        %701 = vrot.lane.b32.xlu0 %v680, 18
        %v702 = vpop.permute.xlu0 %701
        %703 = vrot.lane.b32.xlu0 %v682, 18
        %v704 = vpop.permute.xlu0 %703
        %705 = vrot.lane.b32.xlu0 %v681, 18
        %v706 = vpop.permute.xlu0 %705
        %v719 = vmax.f32 %v593, %v684
        %v720 = vmax.f32 %v594, %v686
        %v721 = vmax.f32 %v595, %v688
        %v722 = vmax.f32 %v596, %v690
        %v723 = vmax.f32 %v597, %v692
        %v724 = vmax.f32 %v598, %v694
        %v725 = vmax.f32 %v599, %v696
        %v726 = vmax.f32 %v600, %v698
        %v727 = vmax.f32 %v601, %v700
        %v728 = vmax.f32 %v602, %v702
        %v729 = vmax.f32 %v603, %v704
        %v730 = vmax.f32 %v604, %v706
        %743 = vrot.lane.b32.xlu0 %v719, 110
        %v744 = vpop.permute.xlu0 %743
        %745 = vrot.lane.b32.xlu0 %v720, 110
        %v746 = vpop.permute.xlu0 %745
        %747 = vrot.lane.b32.xlu0 %v721, 110
        %v748 = vpop.permute.xlu0 %747
        %749 = vrot.lane.b32.xlu0 %v722, 110
        %v750 = vpop.permute.xlu0 %749
        %751 = vrot.lane.b32.xlu0 %v723, 110
        %v752 = vpop.permute.xlu0 %751
        %753 = vrot.lane.b32.xlu0 %v724, 110
        %v754 = vpop.permute.xlu0 %753
        %755 = vrot.lane.b32.xlu0 %v725, 110
        %v756 = vpop.permute.xlu0 %755
        %757 = vrot.lane.b32.xlu0 %v726, 110
        %v758 = vpop.permute.xlu0 %757
        %759 = vrot.lane.b32.xlu0 %v727, 110
        %v760 = vpop.permute.xlu0 %759
        %761 = vrot.lane.b32.xlu0 %v728, 110
        %v762 = vpop.permute.xlu0 %761
        %763 = vrot.lane.b32.xlu0 %v729, 110
        %v764 = vpop.permute.xlu0 %763
        %765 = vrot.lane.b32.xlu0 %v730, 110
        %v766 = vpop.permute.xlu0 %765
        %v775 = vrot.slane %v744, 4
        %v776 = vrot.slane %v750, 4
        %v777 = vrot.slane %v756, 4
        %v778 = vrot.slane %v762, 4
        %v779 = vsel %vm649, %v775, %v748
        %v780 = vsel %vm649, %v776, %v754
        %v781 = vsel %vm649, %v777, %v760
        %v782 = vsel %vm649, %v778, %v766
        %vm787 = vcmask 1045504
        %v788 = vrot.slane %v744, 2
        %v789 = vrot.slane %v746, 2
        %v790 = vsel %vm787, %v788, %v789
        %v791 = vrot.slane %v779, 2
        %v792 = vsel %vm787, %v789, %v791
        %v793 = vrot.slane %v750, 2
        %v794 = vrot.slane %v752, 2
        %v795 = vsel %vm787, %v793, %v794
        %v796 = vrot.slane %v780, 2
        %v797 = vsel %vm787, %v794, %v796
        %v798 = vrot.slane %v756, 2
        %v799 = vrot.slane %v758, 2
        %v800 = vsel %vm787, %v798, %v799
        %v801 = vrot.slane %v781, 2
        %v802 = vsel %vm787, %v799, %v801
        %v803 = vrot.slane %v762, 2
        %v804 = vrot.slane %v764, 2
        %v805 = vsel %vm787, %v803, %v804
        %v806 = vrot.slane %v782, 2
        %v807 = vsel %vm787, %v804, %v806
        %808 = vrot.lane.b32.xlu0 %v790, 18
        %v809 = vpop.permute.xlu0 %808
        %810 = vrot.lane.b32.xlu0 %v792, 18
        %v811 = vpop.permute.xlu0 %810
        %812 = vrot.lane.b32.xlu0 %v791, 18
        %v813 = vpop.permute.xlu0 %812
        %814 = vrot.lane.b32.xlu0 %v795, 18
        %v815 = vpop.permute.xlu0 %814
        %816 = vrot.lane.b32.xlu0 %v797, 18
        %v817 = vpop.permute.xlu0 %816
        %818 = vrot.lane.b32.xlu0 %v796, 18
        %v819 = vpop.permute.xlu0 %818
        %820 = vrot.lane.b32.xlu0 %v800, 18
        %v821 = vpop.permute.xlu0 %820
        %822 = vrot.lane.b32.xlu0 %v802, 18
        %v823 = vpop.permute.xlu0 %822
        %824 = vrot.lane.b32.xlu0 %v801, 18
        %v825 = vpop.permute.xlu0 %824
        %826 = vrot.lane.b32.xlu0 %v805, 18
        %v827 = vpop.permute.xlu0 %826
        %828 = vrot.lane.b32.xlu0 %v807, 18
        %v829 = vpop.permute.xlu0 %828
        %830 = vrot.lane.b32.xlu0 %v806, 18
        %v831 = vpop.permute.xlu0 %830
        %v844 = vmax.f32 %v719, %v809
        %v845 = vmax.f32 %v720, %v811
        %v846 = vmax.f32 %v721, %v813
        %v847 = vmax.f32 %v722, %v815
        %v848 = vmax.f32 %v723, %v817
        %v849 = vmax.f32 %v724, %v819
        %v850 = vmax.f32 %v725, %v821
        %v851 = vmax.f32 %v726, %v823
        %v852 = vmax.f32 %v727, %v825
        %v853 = vmax.f32 %v728, %v827
        %v854 = vmax.f32 %v729, %v829
        %v855 = vmax.f32 %v730, %v831
        %vm856 = vcmask 1043456
        %v857 = vrot.slane %v618, 4
        %v858 = vrot.slane %v620, 4
        %v859 = vsel %vm856, %v857, %v858
        %v860 = vrot.slane %v654, 4
        %v861 = vsel %vm856, %v858, %v860
        %v862 = vrot.slane %v624, 4
        %v863 = vrot.slane %v626, 4
        %v864 = vsel %vm856, %v862, %v863
        %v865 = vrot.slane %v655, 4
        %v866 = vsel %vm856, %v863, %v865
        %v867 = vrot.slane %v630, 4
        %v868 = vrot.slane %v632, 4
        %v869 = vsel %vm856, %v867, %v868
        %v870 = vrot.slane %v656, 4
        %v871 = vsel %vm856, %v868, %v870
        %v872 = vrot.slane %v636, 4
        %v873 = vrot.slane %v638, 4
        %v874 = vsel %vm856, %v872, %v873
        %v875 = vrot.slane %v657, 4
        %v876 = vsel %vm856, %v873, %v875
        %877 = vrot.lane.b32.xlu0 %v859, 18
        %v878 = vpop.permute.xlu0 %877
        %879 = vrot.lane.b32.xlu0 %v861, 18
        %v880 = vpop.permute.xlu0 %879
        %881 = vrot.lane.b32.xlu0 %v860, 18
        %v882 = vpop.permute.xlu0 %881
        %883 = vrot.lane.b32.xlu0 %v864, 18
        %v884 = vpop.permute.xlu0 %883
        %885 = vrot.lane.b32.xlu0 %v866, 18
        %v886 = vpop.permute.xlu0 %885
        %887 = vrot.lane.b32.xlu0 %v865, 18
        %v888 = vpop.permute.xlu0 %887
        %889 = vrot.lane.b32.xlu0 %v869, 18
        %v890 = vpop.permute.xlu0 %889
        %891 = vrot.lane.b32.xlu0 %v871, 18
        %v892 = vpop.permute.xlu0 %891
        %893 = vrot.lane.b32.xlu0 %v870, 18
        %v894 = vpop.permute.xlu0 %893
        %895 = vrot.lane.b32.xlu0 %v874, 18
        %v896 = vpop.permute.xlu0 %895
        %897 = vrot.lane.b32.xlu0 %v876, 18
        %v898 = vpop.permute.xlu0 %897
        %899 = vrot.lane.b32.xlu0 %v875, 18
        %v900 = vpop.permute.xlu0 %899
        %v913 = vmax.f32 %v844, %v878
        %v914 = vmax.f32 %v845, %v880
        %v915 = vmax.f32 %v846, %v882
        %v916 = vmax.f32 %v847, %v884
        %v917 = vmax.f32 %v848, %v886
        %v918 = vmax.f32 %v849, %v888
        %v919 = vmax.f32 %v850, %v890
        %v920 = vmax.f32 %v851, %v892
        %v921 = vmax.f32 %v852, %v894
        %v922 = vmax.f32 %v853, %v896
        %v923 = vmax.f32 %v854, %v898
        %v924 = vmax.f32 %v855, %v900
        %937 = vrot.lane.b32.xlu0 %v913, 110
        %v938 = vpop.permute.xlu0 %937
        %939 = vrot.lane.b32.xlu0 %v914, 110
        %v940 = vpop.permute.xlu0 %939
        %941 = vrot.lane.b32.xlu0 %v915, 110
        %v942 = vpop.permute.xlu0 %941
        %943 = vrot.lane.b32.xlu0 %v916, 110
        %v944 = vpop.permute.xlu0 %943
        %945 = vrot.lane.b32.xlu0 %v917, 110
        %v946 = vpop.permute.xlu0 %945
        %947 = vrot.lane.b32.xlu0 %v918, 110
        %v948 = vpop.permute.xlu0 %947
        %949 = vrot.lane.b32.xlu0 %v919, 110
        %v950 = vpop.permute.xlu0 %949
        %951 = vrot.lane.b32.xlu0 %v920, 110
        %v952 = vpop.permute.xlu0 %951
        %953 = vrot.lane.b32.xlu0 %v921, 110
        %v954 = vpop.permute.xlu0 %953
        %955 = vrot.lane.b32.xlu0 %v922, 110
        %v956 = vpop.permute.xlu0 %955
        %957 = vrot.lane.b32.xlu0 %v923, 110
        %v958 = vpop.permute.xlu0 %957
        %959 = vrot.lane.b32.xlu0 %v924, 110
        %v960 = vpop.permute.xlu0 %959
        %v973 = vrot.slane %v938, 4
        %v974 = vsel %vm649, %v973, %v942
        %v975 = vrot.slane %v944, 4
        %v976 = vsel %vm649, %v975, %v948
        %v977 = vrot.slane %v950, 4
        %v978 = vsel %vm649, %v977, %v954
        %v979 = vrot.slane %v956, 4
        %v980 = vsel %vm649, %v979, %v960
        %v981 = vrot.slane %v940, 4
        %v982 = vrot.slane %v946, 4
        %v983 = vrot.slane %v952, 4
        %v984 = vrot.slane %v958, 4
        %v985 = vrot.slane %v974, 4
        %v986 = vrot.slane %v976, 4
        %v987 = vrot.slane %v978, 4
        %v988 = vrot.slane %v980, 4
        %v989 = vsel %vm649, %v981, %v973
        %v990 = vsel %vm649, %v982, %v975
        %v991 = vsel %vm649, %v983, %v977
        %v992 = vsel %vm649, %v984, %v979
        %v993 = vsel %vm649, %v985, %v981
        %v994 = vsel %vm649, %v986, %v982
        %v995 = vsel %vm649, %v987, %v983
        %v996 = vsel %vm649, %v988, %v984
        %s997 = scalar_lea.vmem %s153, %s189 [#allocation6]
        %vm998 = vcmask 130050
        %999 = vst.msk [vmem:[%s997 - $0x2] sm:$0xfc] %vm998, %v974
        %1000 = vst.msk [vmem:[%s997 + $0x6] sm:$0xff] %vm199, %v989
        %vm1001 = vcmask 123904
        %1002 = vst.msk [vmem:[%s997 + $0xe] sm:$0x3] %vm1001, %v993
        %1003 = vst.msk [vmem:[%s997 + $0xe] sm:$0xfc] %vm998, %v976
        %1004 = vst.msk [vmem:[%s997 + $0x16] sm:$0xff] %vm199, %v990
        %1005 = vst.msk [vmem:[%s997 + $0x1e] sm:$0x3] %vm1001, %v994
        %1006 = vst.msk [vmem:[%s997 + $0x1e] sm:$0xfc] %vm998, %v978
        %1007 = vst.msk [vmem:[%s997 + $0x26] sm:$0xff] %vm199, %v991
        %1008 = vst.msk [vmem:[%s997 + $0x2e] sm:$0x3] %vm1001, %v995
        %1009 = vst.msk [vmem:[%s997 + $0x2e] sm:$0xfc] %vm998, %v980
        %1010 = vst.msk [vmem:[%s997 + $0x36] sm:$0xff] %vm199, %v992
        %1011 = vst.msk [vmem:[%s997 + $0x3e] sm:$0x3] %vm1001, %v996
        %v1024 = vrot.slane %v974, 2
        %v1025 = vrot.slane %v989, 2
        %v1026 = vsel %vm787, %v1024, %v1025
        %v1027 = vrot.slane %v993, 2
        %v1028 = vsel %vm787, %v1025, %v1027
        %v1029 = vrot.slane %v976, 2
        %v1030 = vrot.slane %v990, 2
        %v1031 = vsel %vm787, %v1029, %v1030
        %v1032 = vrot.slane %v994, 2
        %v1033 = vsel %vm787, %v1030, %v1032
        %v1034 = vrot.slane %v978, 2
        %v1035 = vrot.slane %v991, 2
        %v1036 = vsel %vm787, %v1034, %v1035
        %v1037 = vrot.slane %v995, 2
        %v1038 = vsel %vm787, %v1035, %v1037
        %v1039 = vrot.slane %v980, 2
        %v1040 = vrot.slane %v992, 2
        %v1041 = vsel %vm787, %v1039, %v1040
        %v1042 = vrot.slane %v996, 2
        %v1043 = vsel %vm787, %v1040, %v1042
        %v1056 = vsel %vm186, %v1026, -3.4028235e+38
        %v1057 = vsel %vm187, %v1028, -3.4028235e+38
        %v1058 = vsel %vm188, %v1027, -3.4028235e+38
        %v1059 = vsel %vm186, %v1031, -3.4028235e+38
        %v1060 = vsel %vm187, %v1033, -3.4028235e+38
        %v1061 = vsel %vm188, %v1032, -3.4028235e+38
        %v1062 = vsel %vm186, %v1036, -3.4028235e+38
        %v1063 = vsel %vm187, %v1038, -3.4028235e+38
        %v1064 = vsel %vm188, %v1037, -3.4028235e+38
        %v1065 = vsel %vm186, %v1041, -3.4028235e+38
        %v1066 = vsel %vm187, %v1043, -3.4028235e+38
        %v1067 = vsel %vm188, %v1042, -3.4028235e+38
        %1068 = vrot.lane.b32.xlu0 %v1056, 20
        %v1069 = vpop.permute.xlu0 %1068
        %v1070 = vsel %vm220, %v1069, %v1056
        %1071 = vrot.lane.b32.xlu0 %v1057, 20
        %v1072 = vpop.permute.xlu0 %1071
        %v1073 = vsel %vm220, %v1072, %v1057
        %1074 = vrot.lane.b32.xlu0 %v1058, 20
        %v1075 = vpop.permute.xlu0 %1074
        %v1076 = vsel %vm220, %v1075, %v1058
        %1077 = vrot.lane.b32.xlu0 %v1059, 20
        %v1078 = vpop.permute.xlu0 %1077
        %v1079 = vsel %vm220, %v1078, %v1059
        %1080 = vrot.lane.b32.xlu0 %v1060, 20
        %v1081 = vpop.permute.xlu0 %1080
        %v1082 = vsel %vm220, %v1081, %v1060
        %1083 = vrot.lane.b32.xlu0 %v1061, 20
        %v1084 = vpop.permute.xlu0 %1083
        %v1085 = vsel %vm220, %v1084, %v1061
        %1086 = vrot.lane.b32.xlu0 %v1062, 20
        %v1087 = vpop.permute.xlu0 %1086
        %v1088 = vsel %vm220, %v1087, %v1062
        %1089 = vrot.lane.b32.xlu0 %v1063, 20
        %v1090 = vpop.permute.xlu0 %1089
        %v1091 = vsel %vm220, %v1090, %v1063
        %1092 = vrot.lane.b32.xlu0 %v1064, 20
        %v1093 = vpop.permute.xlu0 %1092
        %v1094 = vsel %vm220, %v1093, %v1064
        %1095 = vrot.lane.b32.xlu0 %v1065, 20
        %v1096 = vpop.permute.xlu0 %1095
        %v1097 = vsel %vm220, %v1096, %v1065
        %1098 = vrot.lane.b32.xlu0 %v1066, 20
        %v1099 = vpop.permute.xlu0 %1098
        %v1100 = vsel %vm220, %v1099, %v1066
        %1101 = vrot.lane.b32.xlu0 %v1067, 20
        %v1102 = vpop.permute.xlu0 %1101
        %v1103 = vsel %vm220, %v1102, %v1067
        %1104 = vrot.lane.b32.xlu0 %v1070, 20
        %v1105 = vpop.permute.xlu0 %1104
        %1106 = vrot.lane.b32.xlu0 %v1073, 20
        %v1107 = vpop.permute.xlu0 %1106
        %1108 = vrot.lane.b32.xlu0 %v1076, 20
        %v1109 = vpop.permute.xlu0 %1108
        %1110 = vrot.lane.b32.xlu0 %v1079, 20
        %v1111 = vpop.permute.xlu0 %1110
        %1112 = vrot.lane.b32.xlu0 %v1082, 20
        %v1113 = vpop.permute.xlu0 %1112
        %1114 = vrot.lane.b32.xlu0 %v1085, 20
        %v1115 = vpop.permute.xlu0 %1114
        %1116 = vrot.lane.b32.xlu0 %v1088, 20
        %v1117 = vpop.permute.xlu0 %1116
        %1118 = vrot.lane.b32.xlu0 %v1091, 20
        %v1119 = vpop.permute.xlu0 %1118
        %1120 = vrot.lane.b32.xlu0 %v1094, 20
        %v1121 = vpop.permute.xlu0 %1120
        %1122 = vrot.lane.b32.xlu0 %v1097, 20
        %v1123 = vpop.permute.xlu0 %1122
        %1124 = vrot.lane.b32.xlu0 %v1100, 20
        %v1125 = vpop.permute.xlu0 %1124
        %1126 = vrot.lane.b32.xlu0 %v1103, 20
        %v1127 = vpop.permute.xlu0 %1126
        %v1128 = vsel %vm220, %v1105, %v1056
        %v1129 = vsel %vm220, %v1107, %v1057
        %v1130 = vsel %vm220, %v1109, %v1058
        %v1131 = vsel %vm220, %v1111, %v1059
        %v1132 = vsel %vm220, %v1113, %v1060
        %v1133 = vsel %vm220, %v1115, %v1061
        %v1134 = vsel %vm220, %v1117, %v1062
        %v1135 = vsel %vm220, %v1119, %v1063
        %v1136 = vsel %vm220, %v1121, %v1064
        %v1137 = vsel %vm220, %v1123, %v1065
        %v1138 = vsel %vm220, %v1125, %v1066
        %v1139 = vsel %vm220, %v1127, %v1067
        %1152 = vrot.lane.b32.xlu0 %v1128, 127
        %v1153 = vpop.permute.xlu0 %1152
        %1154 = vrot.lane.b32.xlu0 %v1129, 127
        %v1155 = vpop.permute.xlu0 %1154
        %1156 = vrot.lane.b32.xlu0 %v1130, 127
        %v1157 = vpop.permute.xlu0 %1156
        %1158 = vrot.lane.b32.xlu0 %v1131, 127
        %v1159 = vpop.permute.xlu0 %1158
        %1160 = vrot.lane.b32.xlu0 %v1132, 127
        %v1161 = vpop.permute.xlu0 %1160
        %1162 = vrot.lane.b32.xlu0 %v1133, 127
        %v1163 = vpop.permute.xlu0 %1162
        %1164 = vrot.lane.b32.xlu0 %v1134, 127
        %v1165 = vpop.permute.xlu0 %1164
        %1166 = vrot.lane.b32.xlu0 %v1135, 127
        %v1167 = vpop.permute.xlu0 %1166
        %1168 = vrot.lane.b32.xlu0 %v1136, 127
        %v1169 = vpop.permute.xlu0 %1168
        %1170 = vrot.lane.b32.xlu0 %v1137, 127
        %v1171 = vpop.permute.xlu0 %1170
        %1172 = vrot.lane.b32.xlu0 %v1138, 127
        %v1173 = vpop.permute.xlu0 %1172
        %1174 = vrot.lane.b32.xlu0 %v1139, 127
        %v1175 = vpop.permute.xlu0 %1174
        %v1188 = vmax.f32 %v1056, %v1153
        %v1189 = vmax.f32 %v1057, %v1155
        %v1190 = vmax.f32 %v1058, %v1157
        %v1191 = vmax.f32 %v1059, %v1159
        %v1192 = vmax.f32 %v1060, %v1161
        %v1193 = vmax.f32 %v1061, %v1163
        %v1194 = vmax.f32 %v1062, %v1165
        %v1195 = vmax.f32 %v1063, %v1167
        %v1196 = vmax.f32 %v1064, %v1169
        %v1197 = vmax.f32 %v1065, %v1171
        %v1198 = vmax.f32 %v1066, %v1173
        %v1199 = vmax.f32 %v1067, %v1175
        %1200 = vrot.lane.b32.xlu0 %v1188, 20
        %v1201 = vpop.permute.xlu0 %1200
        %v1202 = vsel %vm220, %v1201, %v1188
        %1203 = vrot.lane.b32.xlu0 %v1189, 20
        %v1204 = vpop.permute.xlu0 %1203
        %v1205 = vsel %vm220, %v1204, %v1189
        %1206 = vrot.lane.b32.xlu0 %v1190, 20
        %v1207 = vpop.permute.xlu0 %1206
        %v1208 = vsel %vm220, %v1207, %v1190
        %1209 = vrot.lane.b32.xlu0 %v1191, 20
        %v1210 = vpop.permute.xlu0 %1209
        %v1211 = vsel %vm220, %v1210, %v1191
        %1212 = vrot.lane.b32.xlu0 %v1192, 20
        %v1213 = vpop.permute.xlu0 %1212
        %v1214 = vsel %vm220, %v1213, %v1192
        %1215 = vrot.lane.b32.xlu0 %v1193, 20
        %v1216 = vpop.permute.xlu0 %1215
        %v1217 = vsel %vm220, %v1216, %v1193
        %1218 = vrot.lane.b32.xlu0 %v1194, 20
        %v1219 = vpop.permute.xlu0 %1218
        %v1220 = vsel %vm220, %v1219, %v1194
        %1221 = vrot.lane.b32.xlu0 %v1195, 20
        %v1222 = vpop.permute.xlu0 %1221
        %v1223 = vsel %vm220, %v1222, %v1195
        %1224 = vrot.lane.b32.xlu0 %v1196, 20
        %v1225 = vpop.permute.xlu0 %1224
        %v1226 = vsel %vm220, %v1225, %v1196
        %1227 = vrot.lane.b32.xlu0 %v1197, 20
        %v1228 = vpop.permute.xlu0 %1227
        %v1229 = vsel %vm220, %v1228, %v1197
        %1230 = vrot.lane.b32.xlu0 %v1198, 20
        %v1231 = vpop.permute.xlu0 %1230
        %v1232 = vsel %vm220, %v1231, %v1198
        %1233 = vrot.lane.b32.xlu0 %v1199, 20
        %v1234 = vpop.permute.xlu0 %1233
        %v1235 = vsel %vm220, %v1234, %v1199
        %1236 = vrot.lane.b32.xlu0 %v1202, 20
        %v1237 = vpop.permute.xlu0 %1236
        %1238 = vrot.lane.b32.xlu0 %v1205, 20
        %v1239 = vpop.permute.xlu0 %1238
        %1240 = vrot.lane.b32.xlu0 %v1208, 20
        %v1241 = vpop.permute.xlu0 %1240
        %1242 = vrot.lane.b32.xlu0 %v1211, 20
        %v1243 = vpop.permute.xlu0 %1242
        %1244 = vrot.lane.b32.xlu0 %v1214, 20
        %v1245 = vpop.permute.xlu0 %1244
        %1246 = vrot.lane.b32.xlu0 %v1217, 20
        %v1247 = vpop.permute.xlu0 %1246
        %1248 = vrot.lane.b32.xlu0 %v1220, 20
        %v1249 = vpop.permute.xlu0 %1248
        %1250 = vrot.lane.b32.xlu0 %v1223, 20
        %v1251 = vpop.permute.xlu0 %1250
        %1252 = vrot.lane.b32.xlu0 %v1226, 20
        %v1253 = vpop.permute.xlu0 %1252
        %1254 = vrot.lane.b32.xlu0 %v1229, 20
        %v1255 = vpop.permute.xlu0 %1254
        %1256 = vrot.lane.b32.xlu0 %v1232, 20
        %v1257 = vpop.permute.xlu0 %1256
        %1258 = vrot.lane.b32.xlu0 %v1235, 20
        %v1259 = vpop.permute.xlu0 %1258
        %v1260 = vsel %vm220, %v1237, %v1188
        %v1261 = vsel %vm220, %v1239, %v1189
        %v1262 = vsel %vm220, %v1241, %v1190
        %v1263 = vsel %vm220, %v1243, %v1191
        %v1264 = vsel %vm220, %v1245, %v1192
        %v1265 = vsel %vm220, %v1247, %v1193
        %v1266 = vsel %vm220, %v1249, %v1194
        %v1267 = vsel %vm220, %v1251, %v1195
        %v1268 = vsel %vm220, %v1253, %v1196
        %v1269 = vsel %vm220, %v1255, %v1197
        %v1270 = vsel %vm220, %v1257, %v1198
        %v1271 = vsel %vm220, %v1259, %v1199
        %1284 = vrot.lane.b32.xlu0 %v1260, 126
        %v1285 = vpop.permute.xlu0 %1284
        %1286 = vrot.lane.b32.xlu0 %v1261, 126
        %v1287 = vpop.permute.xlu0 %1286
        %1288 = vrot.lane.b32.xlu0 %v1262, 126
        %v1289 = vpop.permute.xlu0 %1288
        %1290 = vrot.lane.b32.xlu0 %v1263, 126
        %v1291 = vpop.permute.xlu0 %1290
        %1292 = vrot.lane.b32.xlu0 %v1264, 126
        %v1293 = vpop.permute.xlu0 %1292
        %1294 = vrot.lane.b32.xlu0 %v1265, 126
        %v1295 = vpop.permute.xlu0 %1294
        %1296 = vrot.lane.b32.xlu0 %v1266, 126
        %v1297 = vpop.permute.xlu0 %1296
        %1298 = vrot.lane.b32.xlu0 %v1267, 126
        %v1299 = vpop.permute.xlu0 %1298
        %1300 = vrot.lane.b32.xlu0 %v1268, 126
        %v1301 = vpop.permute.xlu0 %1300
        %1302 = vrot.lane.b32.xlu0 %v1269, 126
        %v1303 = vpop.permute.xlu0 %1302
        %1304 = vrot.lane.b32.xlu0 %v1270, 126
        %v1305 = vpop.permute.xlu0 %1304
        %1306 = vrot.lane.b32.xlu0 %v1271, 126
        %v1307 = vpop.permute.xlu0 %1306
        %v1320 = vmax.f32 %v1188, %v1285
        %v1321 = vmax.f32 %v1189, %v1287
        %v1322 = vmax.f32 %v1190, %v1289
        %v1323 = vmax.f32 %v1191, %v1291
        %v1324 = vmax.f32 %v1192, %v1293
        %v1325 = vmax.f32 %v1193, %v1295
        %v1326 = vmax.f32 %v1194, %v1297
        %v1327 = vmax.f32 %v1195, %v1299
        %v1328 = vmax.f32 %v1196, %v1301
        %v1329 = vmax.f32 %v1197, %v1303
        %v1330 = vmax.f32 %v1198, %v1305
        %v1331 = vmax.f32 %v1199, %v1307
        %1332 = vrot.lane.b32.xlu0 %v1128, 124
        %v1333 = vpop.permute.xlu0 %1332
        %1334 = vrot.lane.b32.xlu0 %v1129, 124
        %v1335 = vpop.permute.xlu0 %1334
        %1336 = vrot.lane.b32.xlu0 %v1130, 124
        %v1337 = vpop.permute.xlu0 %1336
        %1338 = vrot.lane.b32.xlu0 %v1131, 124
        %v1339 = vpop.permute.xlu0 %1338
        %1340 = vrot.lane.b32.xlu0 %v1132, 124
        %v1341 = vpop.permute.xlu0 %1340
        %1342 = vrot.lane.b32.xlu0 %v1133, 124
        %v1343 = vpop.permute.xlu0 %1342
        %1344 = vrot.lane.b32.xlu0 %v1134, 124
        %v1345 = vpop.permute.xlu0 %1344
        %1346 = vrot.lane.b32.xlu0 %v1135, 124
        %v1347 = vpop.permute.xlu0 %1346
        %1348 = vrot.lane.b32.xlu0 %v1136, 124
        %v1349 = vpop.permute.xlu0 %1348
        %1350 = vrot.lane.b32.xlu0 %v1137, 124
        %v1351 = vpop.permute.xlu0 %1350
        %1352 = vrot.lane.b32.xlu0 %v1138, 124
        %v1353 = vpop.permute.xlu0 %1352
        %1354 = vrot.lane.b32.xlu0 %v1139, 124
        %v1355 = vpop.permute.xlu0 %1354
        %v1368 = vmax.f32 %v1320, %v1333
        %v1369 = vmax.f32 %v1321, %v1335
        %v1370 = vmax.f32 %v1322, %v1337
        %v1371 = vmax.f32 %v1323, %v1339
        %v1372 = vmax.f32 %v1324, %v1341
        %v1373 = vmax.f32 %v1325, %v1343
        %v1374 = vmax.f32 %v1326, %v1345
        %v1375 = vmax.f32 %v1327, %v1347
        %v1376 = vmax.f32 %v1328, %v1349
        %v1377 = vmax.f32 %v1329, %v1351
        %v1378 = vmax.f32 %v1330, %v1353
        %v1379 = vmax.f32 %v1331, %v1355
        %1380 = vrot.lane.b32.xlu0 %v1368, 20
        %v1381 = vpop.permute.xlu0 %1380
        %v1382 = vsel %vm220, %v1381, %v1368
        %1383 = vrot.lane.b32.xlu0 %v1369, 20
        %v1384 = vpop.permute.xlu0 %1383
        %v1385 = vsel %vm220, %v1384, %v1369
        %1386 = vrot.lane.b32.xlu0 %v1370, 20
        %v1387 = vpop.permute.xlu0 %1386
        %v1388 = vsel %vm220, %v1387, %v1370
        %1389 = vrot.lane.b32.xlu0 %v1371, 20
        %v1390 = vpop.permute.xlu0 %1389
        %v1391 = vsel %vm220, %v1390, %v1371
        %1392 = vrot.lane.b32.xlu0 %v1372, 20
        %v1393 = vpop.permute.xlu0 %1392
        %v1394 = vsel %vm220, %v1393, %v1372
        %1395 = vrot.lane.b32.xlu0 %v1373, 20
        %v1396 = vpop.permute.xlu0 %1395
        %v1397 = vsel %vm220, %v1396, %v1373
        %1398 = vrot.lane.b32.xlu0 %v1374, 20
        %v1399 = vpop.permute.xlu0 %1398
        %v1400 = vsel %vm220, %v1399, %v1374
        %1401 = vrot.lane.b32.xlu0 %v1375, 20
        %v1402 = vpop.permute.xlu0 %1401
        %v1403 = vsel %vm220, %v1402, %v1375
        %1404 = vrot.lane.b32.xlu0 %v1376, 20
        %v1405 = vpop.permute.xlu0 %1404
        %v1406 = vsel %vm220, %v1405, %v1376
        %1407 = vrot.lane.b32.xlu0 %v1377, 20
        %v1408 = vpop.permute.xlu0 %1407
        %v1409 = vsel %vm220, %v1408, %v1377
        %1410 = vrot.lane.b32.xlu0 %v1378, 20
        %v1411 = vpop.permute.xlu0 %1410
        %v1412 = vsel %vm220, %v1411, %v1378
        %1413 = vrot.lane.b32.xlu0 %v1379, 20
        %v1414 = vpop.permute.xlu0 %1413
        %v1415 = vsel %vm220, %v1414, %v1379
        %1416 = vrot.lane.b32.xlu0 %v1382, 20
        %v1417 = vpop.permute.xlu0 %1416
        %1418 = vrot.lane.b32.xlu0 %v1385, 20
        %v1419 = vpop.permute.xlu0 %1418
        %1420 = vrot.lane.b32.xlu0 %v1388, 20
        %v1421 = vpop.permute.xlu0 %1420
        %1422 = vrot.lane.b32.xlu0 %v1391, 20
        %v1423 = vpop.permute.xlu0 %1422
        %1424 = vrot.lane.b32.xlu0 %v1394, 20
        %v1425 = vpop.permute.xlu0 %1424
        %1426 = vrot.lane.b32.xlu0 %v1397, 20
        %v1427 = vpop.permute.xlu0 %1426
        %1428 = vrot.lane.b32.xlu0 %v1400, 20
        %v1429 = vpop.permute.xlu0 %1428
        %1430 = vrot.lane.b32.xlu0 %v1403, 20
        %v1431 = vpop.permute.xlu0 %1430
        %1432 = vrot.lane.b32.xlu0 %v1406, 20
        %v1433 = vpop.permute.xlu0 %1432
        %1434 = vrot.lane.b32.xlu0 %v1409, 20
        %v1435 = vpop.permute.xlu0 %1434
        %1436 = vrot.lane.b32.xlu0 %v1412, 20
        %v1437 = vpop.permute.xlu0 %1436
        %1438 = vrot.lane.b32.xlu0 %v1415, 20
        %v1439 = vpop.permute.xlu0 %1438
        %v1440 = vsel %vm220, %v1417, %v1368
        %v1441 = vsel %vm220, %v1419, %v1369
        %v1442 = vsel %vm220, %v1421, %v1370
        %v1443 = vsel %vm220, %v1423, %v1371
        %v1444 = vsel %vm220, %v1425, %v1372
        %v1445 = vsel %vm220, %v1427, %v1373
        %v1446 = vsel %vm220, %v1429, %v1374
        %v1447 = vsel %vm220, %v1431, %v1375
        %v1448 = vsel %vm220, %v1433, %v1376
        %v1449 = vsel %vm220, %v1435, %v1377
        %v1450 = vsel %vm220, %v1437, %v1378
        %v1451 = vsel %vm220, %v1439, %v1379
        %1464 = vrot.lane.b32.xlu0 %v1440, 110
        %v1465 = vpop.permute.xlu0 %1464
        %1466 = vrot.lane.b32.xlu0 %v1441, 110
        %v1467 = vpop.permute.xlu0 %1466
        %1468 = vrot.lane.b32.xlu0 %v1442, 110
        %v1469 = vpop.permute.xlu0 %1468
        %1470 = vrot.lane.b32.xlu0 %v1443, 110
        %v1471 = vpop.permute.xlu0 %1470
        %1472 = vrot.lane.b32.xlu0 %v1444, 110
        %v1473 = vpop.permute.xlu0 %1472
        %1474 = vrot.lane.b32.xlu0 %v1445, 110
        %v1475 = vpop.permute.xlu0 %1474
        %1476 = vrot.lane.b32.xlu0 %v1446, 110
        %v1477 = vpop.permute.xlu0 %1476
        %1478 = vrot.lane.b32.xlu0 %v1447, 110
        %v1479 = vpop.permute.xlu0 %1478
        %1480 = vrot.lane.b32.xlu0 %v1448, 110
        %v1481 = vpop.permute.xlu0 %1480
        %1482 = vrot.lane.b32.xlu0 %v1449, 110
        %v1483 = vpop.permute.xlu0 %1482
        %1484 = vrot.lane.b32.xlu0 %v1450, 110
        %v1485 = vpop.permute.xlu0 %1484
        %1486 = vrot.lane.b32.xlu0 %v1451, 110
        %v1487 = vpop.permute.xlu0 %1486
        %v1496 = vrot.slane %v1465, 4
        %v1497 = vrot.slane %v1471, 4
        %v1498 = vrot.slane %v1477, 4
        %v1499 = vrot.slane %v1483, 4
        %v1500 = vsel %vm649, %v1496, %v1469
        %v1501 = vsel %vm649, %v1497, %v1475
        %v1502 = vsel %vm649, %v1498, %v1481
        %v1503 = vsel %vm649, %v1499, %v1487
        %v1508 = vrot.slane %v1465, 1
        %v1509 = vrot.slane %v1467, 1
        %v1510 = vsel %vm662, %v1508, %v1509
        %v1511 = vrot.slane %v1500, 1
        %v1512 = vsel %vm662, %v1509, %v1511
        %v1513 = vrot.slane %v1471, 1
        %v1514 = vrot.slane %v1473, 1
        %v1515 = vsel %vm662, %v1513, %v1514
        %v1516 = vrot.slane %v1501, 1
        %v1517 = vsel %vm662, %v1514, %v1516
        %v1518 = vrot.slane %v1477, 1
        %v1519 = vrot.slane %v1479, 1
        %v1520 = vsel %vm662, %v1518, %v1519
        %v1521 = vrot.slane %v1502, 1
        %v1522 = vsel %vm662, %v1519, %v1521
        %v1523 = vrot.slane %v1483, 1
        %v1524 = vrot.slane %v1485, 1
        %v1525 = vsel %vm662, %v1523, %v1524
        %v1526 = vrot.slane %v1503, 1
        %v1527 = vsel %vm662, %v1524, %v1526
        %1528 = vrot.lane.b32.xlu0 %v1510, 18
        %v1529 = vpop.permute.xlu0 %1528
        %1530 = vrot.lane.b32.xlu0 %v1512, 18
        %v1531 = vpop.permute.xlu0 %1530
        %1532 = vrot.lane.b32.xlu0 %v1511, 18
        %v1533 = vpop.permute.xlu0 %1532
        %1534 = vrot.lane.b32.xlu0 %v1515, 18
        %v1535 = vpop.permute.xlu0 %1534
        %1536 = vrot.lane.b32.xlu0 %v1517, 18
        %v1537 = vpop.permute.xlu0 %1536
        %1538 = vrot.lane.b32.xlu0 %v1516, 18
        %v1539 = vpop.permute.xlu0 %1538
        %1540 = vrot.lane.b32.xlu0 %v1520, 18
        %v1541 = vpop.permute.xlu0 %1540
        %1542 = vrot.lane.b32.xlu0 %v1522, 18
        %v1543 = vpop.permute.xlu0 %1542
        %1544 = vrot.lane.b32.xlu0 %v1521, 18
        %v1545 = vpop.permute.xlu0 %1544
        %1546 = vrot.lane.b32.xlu0 %v1525, 18
        %v1547 = vpop.permute.xlu0 %1546
        %1548 = vrot.lane.b32.xlu0 %v1527, 18
        %v1549 = vpop.permute.xlu0 %1548
        %1550 = vrot.lane.b32.xlu0 %v1526, 18
        %v1551 = vpop.permute.xlu0 %1550
        %v1564 = vmax.f32 %v1440, %v1529
        %v1565 = vmax.f32 %v1441, %v1531
        %v1566 = vmax.f32 %v1442, %v1533
        %v1567 = vmax.f32 %v1443, %v1535
        %v1568 = vmax.f32 %v1444, %v1537
        %v1569 = vmax.f32 %v1445, %v1539
        %v1570 = vmax.f32 %v1446, %v1541
        %v1571 = vmax.f32 %v1447, %v1543
        %v1572 = vmax.f32 %v1448, %v1545
        %v1573 = vmax.f32 %v1449, %v1547
        %v1574 = vmax.f32 %v1450, %v1549
        %v1575 = vmax.f32 %v1451, %v1551
        %1588 = vrot.lane.b32.xlu0 %v1564, 110
        %v1589 = vpop.permute.xlu0 %1588
        %1590 = vrot.lane.b32.xlu0 %v1565, 110
        %v1591 = vpop.permute.xlu0 %1590
        %1592 = vrot.lane.b32.xlu0 %v1566, 110
        %v1593 = vpop.permute.xlu0 %1592
        %1594 = vrot.lane.b32.xlu0 %v1567, 110
        %v1595 = vpop.permute.xlu0 %1594
        %1596 = vrot.lane.b32.xlu0 %v1568, 110
        %v1597 = vpop.permute.xlu0 %1596
        %1598 = vrot.lane.b32.xlu0 %v1569, 110
        %v1599 = vpop.permute.xlu0 %1598
        %1600 = vrot.lane.b32.xlu0 %v1570, 110
        %v1601 = vpop.permute.xlu0 %1600
        %1602 = vrot.lane.b32.xlu0 %v1571, 110
        %v1603 = vpop.permute.xlu0 %1602
        %1604 = vrot.lane.b32.xlu0 %v1572, 110
        %v1605 = vpop.permute.xlu0 %1604
        %1606 = vrot.lane.b32.xlu0 %v1573, 110
        %v1607 = vpop.permute.xlu0 %1606
        %1608 = vrot.lane.b32.xlu0 %v1574, 110
        %v1609 = vpop.permute.xlu0 %1608
        %1610 = vrot.lane.b32.xlu0 %v1575, 110
        %v1611 = vpop.permute.xlu0 %1610
        %v1620 = vrot.slane %v1589, 4
        %v1621 = vrot.slane %v1595, 4
        %v1622 = vrot.slane %v1601, 4
        %v1623 = vrot.slane %v1607, 4
        %v1624 = vsel %vm649, %v1620, %v1593
        %v1625 = vsel %vm649, %v1621, %v1599
        %v1626 = vsel %vm649, %v1622, %v1605
        %v1627 = vsel %vm649, %v1623, %v1611
        %v1632 = vrot.slane %v1589, 2
        %v1633 = vrot.slane %v1591, 2
        %v1634 = vsel %vm787, %v1632, %v1633
        %v1635 = vrot.slane %v1624, 2
        %v1636 = vsel %vm787, %v1633, %v1635
        %v1637 = vrot.slane %v1595, 2
        %v1638 = vrot.slane %v1597, 2
        %v1639 = vsel %vm787, %v1637, %v1638
        %v1640 = vrot.slane %v1625, 2
        %v1641 = vsel %vm787, %v1638, %v1640
        %v1642 = vrot.slane %v1601, 2
        %v1643 = vrot.slane %v1603, 2
        %v1644 = vsel %vm787, %v1642, %v1643
        %v1645 = vrot.slane %v1626, 2
        %v1646 = vsel %vm787, %v1643, %v1645
        %v1647 = vrot.slane %v1607, 2
        %v1648 = vrot.slane %v1609, 2
        %v1649 = vsel %vm787, %v1647, %v1648
        %v1650 = vrot.slane %v1627, 2
        %v1651 = vsel %vm787, %v1648, %v1650
        %1652 = vrot.lane.b32.xlu0 %v1634, 18
        %v1653 = vpop.permute.xlu0 %1652
        %1654 = vrot.lane.b32.xlu0 %v1636, 18
        %v1655 = vpop.permute.xlu0 %1654
        %1656 = vrot.lane.b32.xlu0 %v1635, 18
        %v1657 = vpop.permute.xlu0 %1656
        %1658 = vrot.lane.b32.xlu0 %v1639, 18
        %v1659 = vpop.permute.xlu0 %1658
        %1660 = vrot.lane.b32.xlu0 %v1641, 18
        %v1661 = vpop.permute.xlu0 %1660
        %1662 = vrot.lane.b32.xlu0 %v1640, 18
        %v1663 = vpop.permute.xlu0 %1662
        %1664 = vrot.lane.b32.xlu0 %v1644, 18
        %v1665 = vpop.permute.xlu0 %1664
        %1666 = vrot.lane.b32.xlu0 %v1646, 18
        %v1667 = vpop.permute.xlu0 %1666
        %1668 = vrot.lane.b32.xlu0 %v1645, 18
        %v1669 = vpop.permute.xlu0 %1668
        %1670 = vrot.lane.b32.xlu0 %v1649, 18
        %v1671 = vpop.permute.xlu0 %1670
        %1672 = vrot.lane.b32.xlu0 %v1651, 18
        %v1673 = vpop.permute.xlu0 %1672
        %1674 = vrot.lane.b32.xlu0 %v1650, 18
        %v1675 = vpop.permute.xlu0 %1674
        %v1688 = vmax.f32 %v1564, %v1653
        %v1689 = vmax.f32 %v1565, %v1655
        %v1690 = vmax.f32 %v1566, %v1657
        %v1691 = vmax.f32 %v1567, %v1659
        %v1692 = vmax.f32 %v1568, %v1661
        %v1693 = vmax.f32 %v1569, %v1663
        %v1694 = vmax.f32 %v1570, %v1665
        %v1695 = vmax.f32 %v1571, %v1667
        %v1696 = vmax.f32 %v1572, %v1669
        %v1697 = vmax.f32 %v1573, %v1671
        %v1698 = vmax.f32 %v1574, %v1673
        %v1699 = vmax.f32 %v1575, %v1675
        %v1700 = vrot.slane %v1465, 4
        %v1701 = vrot.slane %v1467, 4
        %v1702 = vsel %vm856, %v1700, %v1701
        %v1703 = vrot.slane %v1500, 4
        %v1704 = vsel %vm856, %v1701, %v1703
        %v1705 = vrot.slane %v1471, 4
        %v1706 = vrot.slane %v1473, 4
        %v1707 = vsel %vm856, %v1705, %v1706
        %v1708 = vrot.slane %v1501, 4
        %v1709 = vsel %vm856, %v1706, %v1708
        %v1710 = vrot.slane %v1477, 4
        %v1711 = vrot.slane %v1479, 4
        %v1712 = vsel %vm856, %v1710, %v1711
        %v1713 = vrot.slane %v1502, 4
        %v1714 = vsel %vm856, %v1711, %v1713
        %v1715 = vrot.slane %v1483, 4
        %v1716 = vrot.slane %v1485, 4
        %v1717 = vsel %vm856, %v1715, %v1716
        %v1718 = vrot.slane %v1503, 4
        %v1719 = vsel %vm856, %v1716, %v1718
        %1720 = vrot.lane.b32.xlu0 %v1702, 18
        %v1721 = vpop.permute.xlu0 %1720
        %1722 = vrot.lane.b32.xlu0 %v1704, 18
        %v1723 = vpop.permute.xlu0 %1722
        %1724 = vrot.lane.b32.xlu0 %v1703, 18
        %v1725 = vpop.permute.xlu0 %1724
        %1726 = vrot.lane.b32.xlu0 %v1707, 18
        %v1727 = vpop.permute.xlu0 %1726
        %1728 = vrot.lane.b32.xlu0 %v1709, 18
        %v1729 = vpop.permute.xlu0 %1728
        %1730 = vrot.lane.b32.xlu0 %v1708, 18
        %v1731 = vpop.permute.xlu0 %1730
        %1732 = vrot.lane.b32.xlu0 %v1712, 18
        %v1733 = vpop.permute.xlu0 %1732
        %1734 = vrot.lane.b32.xlu0 %v1714, 18
        %v1735 = vpop.permute.xlu0 %1734
        %1736 = vrot.lane.b32.xlu0 %v1713, 18
        %v1737 = vpop.permute.xlu0 %1736
        %1738 = vrot.lane.b32.xlu0 %v1717, 18
        %v1739 = vpop.permute.xlu0 %1738
        %1740 = vrot.lane.b32.xlu0 %v1719, 18
        %v1741 = vpop.permute.xlu0 %1740
        %1742 = vrot.lane.b32.xlu0 %v1718, 18
        %v1743 = vpop.permute.xlu0 %1742
        %v1756 = vmax.f32 %v1688, %v1721
        %v1757 = vmax.f32 %v1689, %v1723
        %v1758 = vmax.f32 %v1690, %v1725
        %v1759 = vmax.f32 %v1691, %v1727
        %v1760 = vmax.f32 %v1692, %v1729
        %v1761 = vmax.f32 %v1693, %v1731
        %v1762 = vmax.f32 %v1694, %v1733
        %v1763 = vmax.f32 %v1695, %v1735
        %v1764 = vmax.f32 %v1696, %v1737
        %v1765 = vmax.f32 %v1697, %v1739
        %v1766 = vmax.f32 %v1698, %v1741
        %v1767 = vmax.f32 %v1699, %v1743
        %1780 = vrot.lane.b32.xlu0 %v1756, 110
        %v1781 = vpop.permute.xlu0 %1780
        %1782 = vrot.lane.b32.xlu0 %v1757, 110
        %v1783 = vpop.permute.xlu0 %1782
        %1784 = vrot.lane.b32.xlu0 %v1758, 110
        %v1785 = vpop.permute.xlu0 %1784
        %1786 = vrot.lane.b32.xlu0 %v1759, 110
        %v1787 = vpop.permute.xlu0 %1786
        %1788 = vrot.lane.b32.xlu0 %v1760, 110
        %v1789 = vpop.permute.xlu0 %1788
        %1790 = vrot.lane.b32.xlu0 %v1761, 110
        %v1791 = vpop.permute.xlu0 %1790
        %1792 = vrot.lane.b32.xlu0 %v1762, 110
        %v1793 = vpop.permute.xlu0 %1792
        %1794 = vrot.lane.b32.xlu0 %v1763, 110
        %v1795 = vpop.permute.xlu0 %1794
        %1796 = vrot.lane.b32.xlu0 %v1764, 110
        %v1797 = vpop.permute.xlu0 %1796
        %1798 = vrot.lane.b32.xlu0 %v1765, 110
        %v1799 = vpop.permute.xlu0 %1798
        %1800 = vrot.lane.b32.xlu0 %v1766, 110
        %v1801 = vpop.permute.xlu0 %1800
        %1802 = vrot.lane.b32.xlu0 %v1767, 110
        %v1803 = vpop.permute.xlu0 %1802
        %v1816 = vrot.slane %v1781, 4
        %v1817 = vsel %vm649, %v1816, %v1785
        %v1818 = vrot.slane %v1787, 4
        %v1819 = vsel %vm649, %v1818, %v1791
        %v1820 = vrot.slane %v1793, 4
        %v1821 = vsel %vm649, %v1820, %v1797
        %v1822 = vrot.slane %v1799, 4
        %v1823 = vsel %vm649, %v1822, %v1803
        %v1824 = vrot.slane %v1783, 4
        %v1825 = vrot.slane %v1789, 4
        %v1826 = vrot.slane %v1795, 4
        %v1827 = vrot.slane %v1801, 4
        %v1828 = vrot.slane %v1817, 4
        %v1829 = vrot.slane %v1819, 4
        %v1830 = vrot.slane %v1821, 4
        %v1831 = vrot.slane %v1823, 4
        %v1832 = vsel %vm649, %v1824, %v1816
        %v1833 = vsel %vm649, %v1825, %v1818
        %v1834 = vsel %vm649, %v1826, %v1820
        %v1835 = vsel %vm649, %v1827, %v1822
        %v1836 = vsel %vm649, %v1828, %v1824
        %v1837 = vsel %vm649, %v1829, %v1825
        %v1838 = vsel %vm649, %v1830, %v1826
        %v1839 = vsel %vm649, %v1831, %v1827
        %s1840 = sadd.s32 %s189, 64
        %s1841 = scalar_lea.vmem %s153, %s1840 [#allocation6]
        %1842 = vst.msk [vmem:[%s1841 - $0x2] sm:$0xfc] %vm998, %v1817
        %1843 = vst.msk [vmem:[%s1841 + $0x6] sm:$0xff] %vm199, %v1832
        %1844 = vst.msk [vmem:[%s1841 + $0xe] sm:$0x3] %vm1001, %v1836
        %1845 = vst.msk [vmem:[%s1841 + $0xe] sm:$0xfc] %vm998, %v1819
        %1846 = vst.msk [vmem:[%s1841 + $0x16] sm:$0xff] %vm199, %v1833
        %1847 = vst.msk [vmem:[%s1841 + $0x1e] sm:$0x3] %vm1001, %v1837
        %1848 = vst.msk [vmem:[%s1841 + $0x1e] sm:$0xfc] %vm998, %v1821
        %1849 = vst.msk [vmem:[%s1841 + $0x26] sm:$0xff] %vm199, %v1834
        %1850 = vst.msk [vmem:[%s1841 + $0x2e] sm:$0x3] %vm1001, %v1838
        %1851 = vst.msk [vmem:[%s1841 + $0x2e] sm:$0xfc] %vm998, %v1823
        %1852 = vst.msk [vmem:[%s1841 + $0x36] sm:$0xff] %vm199, %v1835
        %1853 = vst.msk [vmem:[%s1841 + $0x3e] sm:$0x3] %vm1001, %v1839
        %v1866 = vrot.slane %v1817, 2
        %v1867 = vrot.slane %v1832, 2
        %v1868 = vsel %vm787, %v1866, %v1867
        %v1869 = vrot.slane %v1836, 2
        %v1870 = vsel %vm787, %v1867, %v1869
        %v1871 = vrot.slane %v1819, 2
        %v1872 = vrot.slane %v1833, 2
        %v1873 = vsel %vm787, %v1871, %v1872
        %v1874 = vrot.slane %v1837, 2
        %v1875 = vsel %vm787, %v1872, %v1874
        %v1876 = vrot.slane %v1821, 2
        %v1877 = vrot.slane %v1834, 2
        %v1878 = vsel %vm787, %v1876, %v1877
        %v1879 = vrot.slane %v1838, 2
        %v1880 = vsel %vm787, %v1877, %v1879
        %v1881 = vrot.slane %v1823, 2
        %v1882 = vrot.slane %v1835, 2
        %v1883 = vsel %vm787, %v1881, %v1882
        %v1884 = vrot.slane %v1839, 2
        %v1885 = vsel %vm787, %v1882, %v1884
        %v1898 = vsel %vm186, %v1868, -3.4028235e+38
        %v1899 = vsel %vm187, %v1870, -3.4028235e+38
        %v1900 = vsel %vm188, %v1869, -3.4028235e+38
        %v1901 = vsel %vm186, %v1873, -3.4028235e+38
        %v1902 = vsel %vm187, %v1875, -3.4028235e+38
        %v1903 = vsel %vm188, %v1874, -3.4028235e+38
        %v1904 = vsel %vm186, %v1878, -3.4028235e+38
        %v1905 = vsel %vm187, %v1880, -3.4028235e+38
        %v1906 = vsel %vm188, %v1879, -3.4028235e+38
        %v1907 = vsel %vm186, %v1883, -3.4028235e+38
        %v1908 = vsel %vm187, %v1885, -3.4028235e+38
        %v1909 = vsel %vm188, %v1884, -3.4028235e+38
        %1910 = vrot.lane.b32.xlu0 %v1898, 20
        %v1911 = vpop.permute.xlu0 %1910
        %v1912 = vsel %vm220, %v1911, %v1898
        %1913 = vrot.lane.b32.xlu0 %v1899, 20
        %v1914 = vpop.permute.xlu0 %1913
        %v1915 = vsel %vm220, %v1914, %v1899
        %1916 = vrot.lane.b32.xlu0 %v1900, 20
        %v1917 = vpop.permute.xlu0 %1916
        %v1918 = vsel %vm220, %v1917, %v1900
        %1919 = vrot.lane.b32.xlu0 %v1901, 20
        %v1920 = vpop.permute.xlu0 %1919
        %v1921 = vsel %vm220, %v1920, %v1901
        %1922 = vrot.lane.b32.xlu0 %v1902, 20
        %v1923 = vpop.permute.xlu0 %1922
        %v1924 = vsel %vm220, %v1923, %v1902
        %1925 = vrot.lane.b32.xlu0 %v1903, 20
        %v1926 = vpop.permute.xlu0 %1925
        %v1927 = vsel %vm220, %v1926, %v1903
        %1928 = vrot.lane.b32.xlu0 %v1904, 20
        %v1929 = vpop.permute.xlu0 %1928
        %v1930 = vsel %vm220, %v1929, %v1904
        %1931 = vrot.lane.b32.xlu0 %v1905, 20
        %v1932 = vpop.permute.xlu0 %1931
        %v1933 = vsel %vm220, %v1932, %v1905
        %1934 = vrot.lane.b32.xlu0 %v1906, 20
        %v1935 = vpop.permute.xlu0 %1934
        %v1936 = vsel %vm220, %v1935, %v1906
        %1937 = vrot.lane.b32.xlu0 %v1907, 20
        %v1938 = vpop.permute.xlu0 %1937
        %v1939 = vsel %vm220, %v1938, %v1907
        %1940 = vrot.lane.b32.xlu0 %v1908, 20
        %v1941 = vpop.permute.xlu0 %1940
        %v1942 = vsel %vm220, %v1941, %v1908
        %1943 = vrot.lane.b32.xlu0 %v1909, 20
        %v1944 = vpop.permute.xlu0 %1943
        %v1945 = vsel %vm220, %v1944, %v1909
        %1946 = vrot.lane.b32.xlu0 %v1912, 20
        %v1947 = vpop.permute.xlu0 %1946
        %1948 = vrot.lane.b32.xlu0 %v1915, 20
        %v1949 = vpop.permute.xlu0 %1948
        %1950 = vrot.lane.b32.xlu0 %v1918, 20
        %v1951 = vpop.permute.xlu0 %1950
        %1952 = vrot.lane.b32.xlu0 %v1921, 20
        %v1953 = vpop.permute.xlu0 %1952
        %1954 = vrot.lane.b32.xlu0 %v1924, 20
        %v1955 = vpop.permute.xlu0 %1954
        %1956 = vrot.lane.b32.xlu0 %v1927, 20
        %v1957 = vpop.permute.xlu0 %1956
        %1958 = vrot.lane.b32.xlu0 %v1930, 20
        %v1959 = vpop.permute.xlu0 %1958
        %1960 = vrot.lane.b32.xlu0 %v1933, 20
        %v1961 = vpop.permute.xlu0 %1960
        %1962 = vrot.lane.b32.xlu0 %v1936, 20
        %v1963 = vpop.permute.xlu0 %1962
        %1964 = vrot.lane.b32.xlu0 %v1939, 20
        %v1965 = vpop.permute.xlu0 %1964
        %1966 = vrot.lane.b32.xlu0 %v1942, 20
        %v1967 = vpop.permute.xlu0 %1966
        %1968 = vrot.lane.b32.xlu0 %v1945, 20
        %v1969 = vpop.permute.xlu0 %1968
        %v1970 = vsel %vm220, %v1947, %v1898
        %v1971 = vsel %vm220, %v1949, %v1899
        %v1972 = vsel %vm220, %v1951, %v1900
        %v1973 = vsel %vm220, %v1953, %v1901
        %v1974 = vsel %vm220, %v1955, %v1902
        %v1975 = vsel %vm220, %v1957, %v1903
        %v1976 = vsel %vm220, %v1959, %v1904
        %v1977 = vsel %vm220, %v1961, %v1905
        %v1978 = vsel %vm220, %v1963, %v1906
        %v1979 = vsel %vm220, %v1965, %v1907
        %v1980 = vsel %vm220, %v1967, %v1908
        %v1981 = vsel %vm220, %v1969, %v1909
        %1994 = vrot.lane.b32.xlu0 %v1970, 127
        %v1995 = vpop.permute.xlu0 %1994
        %1996 = vrot.lane.b32.xlu0 %v1971, 127
        %v1997 = vpop.permute.xlu0 %1996
        %1998 = vrot.lane.b32.xlu0 %v1972, 127
        %v1999 = vpop.permute.xlu0 %1998
        %2000 = vrot.lane.b32.xlu0 %v1973, 127
        %v2001 = vpop.permute.xlu0 %2000
        %2002 = vrot.lane.b32.xlu0 %v1974, 127
        %v2003 = vpop.permute.xlu0 %2002
        %2004 = vrot.lane.b32.xlu0 %v1975, 127
        %v2005 = vpop.permute.xlu0 %2004
        %2006 = vrot.lane.b32.xlu0 %v1976, 127
        %v2007 = vpop.permute.xlu0 %2006
        %2008 = vrot.lane.b32.xlu0 %v1977, 127
        %v2009 = vpop.permute.xlu0 %2008
        %2010 = vrot.lane.b32.xlu0 %v1978, 127
        %v2011 = vpop.permute.xlu0 %2010
        %2012 = vrot.lane.b32.xlu0 %v1979, 127
        %v2013 = vpop.permute.xlu0 %2012
        %2014 = vrot.lane.b32.xlu0 %v1980, 127
        %v2015 = vpop.permute.xlu0 %2014
        %2016 = vrot.lane.b32.xlu0 %v1981, 127
        %v2017 = vpop.permute.xlu0 %2016
        %v2030 = vmax.f32 %v1898, %v1995
        %v2031 = vmax.f32 %v1899, %v1997
        %v2032 = vmax.f32 %v1900, %v1999
        %v2033 = vmax.f32 %v1901, %v2001
        %v2034 = vmax.f32 %v1902, %v2003
        %v2035 = vmax.f32 %v1903, %v2005
        %v2036 = vmax.f32 %v1904, %v2007
        %v2037 = vmax.f32 %v1905, %v2009
        %v2038 = vmax.f32 %v1906, %v2011
        %v2039 = vmax.f32 %v1907, %v2013
        %v2040 = vmax.f32 %v1908, %v2015
        %v2041 = vmax.f32 %v1909, %v2017
        %2042 = vrot.lane.b32.xlu0 %v2030, 20
        %v2043 = vpop.permute.xlu0 %2042
        %v2044 = vsel %vm220, %v2043, %v2030
        %2045 = vrot.lane.b32.xlu0 %v2031, 20
        %v2046 = vpop.permute.xlu0 %2045
        %v2047 = vsel %vm220, %v2046, %v2031
        %2048 = vrot.lane.b32.xlu0 %v2032, 20
        %v2049 = vpop.permute.xlu0 %2048
        %v2050 = vsel %vm220, %v2049, %v2032
        %2051 = vrot.lane.b32.xlu0 %v2033, 20
        %v2052 = vpop.permute.xlu0 %2051
        %v2053 = vsel %vm220, %v2052, %v2033
        %2054 = vrot.lane.b32.xlu0 %v2034, 20
        %v2055 = vpop.permute.xlu0 %2054
        %v2056 = vsel %vm220, %v2055, %v2034
        %2057 = vrot.lane.b32.xlu0 %v2035, 20
        %v2058 = vpop.permute.xlu0 %2057
        %v2059 = vsel %vm220, %v2058, %v2035
        %2060 = vrot.lane.b32.xlu0 %v2036, 20
        %v2061 = vpop.permute.xlu0 %2060
        %v2062 = vsel %vm220, %v2061, %v2036
        %2063 = vrot.lane.b32.xlu0 %v2037, 20
        %v2064 = vpop.permute.xlu0 %2063
        %v2065 = vsel %vm220, %v2064, %v2037
        %2066 = vrot.lane.b32.xlu0 %v2038, 20
        %v2067 = vpop.permute.xlu0 %2066
        %v2068 = vsel %vm220, %v2067, %v2038
        %2069 = vrot.lane.b32.xlu0 %v2039, 20
        %v2070 = vpop.permute.xlu0 %2069
        %v2071 = vsel %vm220, %v2070, %v2039
        %2072 = vrot.lane.b32.xlu0 %v2040, 20
        %v2073 = vpop.permute.xlu0 %2072
        %v2074 = vsel %vm220, %v2073, %v2040
        %2075 = vrot.lane.b32.xlu0 %v2041, 20
        %v2076 = vpop.permute.xlu0 %2075
        %v2077 = vsel %vm220, %v2076, %v2041
        %2078 = vrot.lane.b32.xlu0 %v2044, 20
        %v2079 = vpop.permute.xlu0 %2078
        %2080 = vrot.lane.b32.xlu0 %v2047, 20
        %v2081 = vpop.permute.xlu0 %2080
        %2082 = vrot.lane.b32.xlu0 %v2050, 20
        %v2083 = vpop.permute.xlu0 %2082
        %2084 = vrot.lane.b32.xlu0 %v2053, 20
        %v2085 = vpop.permute.xlu0 %2084
        %2086 = vrot.lane.b32.xlu0 %v2056, 20
        %v2087 = vpop.permute.xlu0 %2086
        %2088 = vrot.lane.b32.xlu0 %v2059, 20
        %v2089 = vpop.permute.xlu0 %2088
        %2090 = vrot.lane.b32.xlu0 %v2062, 20
        %v2091 = vpop.permute.xlu0 %2090
        %2092 = vrot.lane.b32.xlu0 %v2065, 20
        %v2093 = vpop.permute.xlu0 %2092
        %2094 = vrot.lane.b32.xlu0 %v2068, 20
        %v2095 = vpop.permute.xlu0 %2094
        %2096 = vrot.lane.b32.xlu0 %v2071, 20
        %v2097 = vpop.permute.xlu0 %2096
        %2098 = vrot.lane.b32.xlu0 %v2074, 20
        %v2099 = vpop.permute.xlu0 %2098
        %2100 = vrot.lane.b32.xlu0 %v2077, 20
        %v2101 = vpop.permute.xlu0 %2100
        %v2102 = vsel %vm220, %v2079, %v2030
        %v2103 = vsel %vm220, %v2081, %v2031
        %v2104 = vsel %vm220, %v2083, %v2032
        %v2105 = vsel %vm220, %v2085, %v2033
        %v2106 = vsel %vm220, %v2087, %v2034
        %v2107 = vsel %vm220, %v2089, %v2035
        %v2108 = vsel %vm220, %v2091, %v2036
        %v2109 = vsel %vm220, %v2093, %v2037
        %v2110 = vsel %vm220, %v2095, %v2038
        %v2111 = vsel %vm220, %v2097, %v2039
        %v2112 = vsel %vm220, %v2099, %v2040
        %v2113 = vsel %vm220, %v2101, %v2041
        %2126 = vrot.lane.b32.xlu0 %v2102, 126
        %v2127 = vpop.permute.xlu0 %2126
        %2128 = vrot.lane.b32.xlu0 %v2103, 126
        %v2129 = vpop.permute.xlu0 %2128
        %2130 = vrot.lane.b32.xlu0 %v2104, 126
        %v2131 = vpop.permute.xlu0 %2130
        %2132 = vrot.lane.b32.xlu0 %v2105, 126
        %v2133 = vpop.permute.xlu0 %2132
        %2134 = vrot.lane.b32.xlu0 %v2106, 126
        %v2135 = vpop.permute.xlu0 %2134
        %2136 = vrot.lane.b32.xlu0 %v2107, 126
        %v2137 = vpop.permute.xlu0 %2136
        %2138 = vrot.lane.b32.xlu0 %v2108, 126
        %v2139 = vpop.permute.xlu0 %2138
        %2140 = vrot.lane.b32.xlu0 %v2109, 126
        %v2141 = vpop.permute.xlu0 %2140
        %2142 = vrot.lane.b32.xlu0 %v2110, 126
        %v2143 = vpop.permute.xlu0 %2142
        %2144 = vrot.lane.b32.xlu0 %v2111, 126
        %v2145 = vpop.permute.xlu0 %2144
        %2146 = vrot.lane.b32.xlu0 %v2112, 126
        %v2147 = vpop.permute.xlu0 %2146
        %2148 = vrot.lane.b32.xlu0 %v2113, 126
        %v2149 = vpop.permute.xlu0 %2148
        %v2162 = vmax.f32 %v2030, %v2127
        %v2163 = vmax.f32 %v2031, %v2129
        %v2164 = vmax.f32 %v2032, %v2131
        %v2165 = vmax.f32 %v2033, %v2133
        %v2166 = vmax.f32 %v2034, %v2135
        %v2167 = vmax.f32 %v2035, %v2137
        %v2168 = vmax.f32 %v2036, %v2139
        %v2169 = vmax.f32 %v2037, %v2141
        %v2170 = vmax.f32 %v2038, %v2143
        %v2171 = vmax.f32 %v2039, %v2145
        %v2172 = vmax.f32 %v2040, %v2147
        %v2173 = vmax.f32 %v2041, %v2149
        %2174 = vrot.lane.b32.xlu0 %v1970, 124
        %v2175 = vpop.permute.xlu0 %2174
        %2176 = vrot.lane.b32.xlu0 %v1971, 124
        %v2177 = vpop.permute.xlu0 %2176
        %2178 = vrot.lane.b32.xlu0 %v1972, 124
        %v2179 = vpop.permute.xlu0 %2178
        %2180 = vrot.lane.b32.xlu0 %v1973, 124
        %v2181 = vpop.permute.xlu0 %2180
        %2182 = vrot.lane.b32.xlu0 %v1974, 124
        %v2183 = vpop.permute.xlu0 %2182
        %2184 = vrot.lane.b32.xlu0 %v1975, 124
        %v2185 = vpop.permute.xlu0 %2184
        %2186 = vrot.lane.b32.xlu0 %v1976, 124
        %v2187 = vpop.permute.xlu0 %2186
        %2188 = vrot.lane.b32.xlu0 %v1977, 124
        %v2189 = vpop.permute.xlu0 %2188
        %2190 = vrot.lane.b32.xlu0 %v1978, 124
        %v2191 = vpop.permute.xlu0 %2190
        %2192 = vrot.lane.b32.xlu0 %v1979, 124
        %v2193 = vpop.permute.xlu0 %2192
        %2194 = vrot.lane.b32.xlu0 %v1980, 124
        %v2195 = vpop.permute.xlu0 %2194
        %2196 = vrot.lane.b32.xlu0 %v1981, 124
        %v2197 = vpop.permute.xlu0 %2196
        %v2210 = vmax.f32 %v2162, %v2175
        %v2211 = vmax.f32 %v2163, %v2177
        %v2212 = vmax.f32 %v2164, %v2179
        %v2213 = vmax.f32 %v2165, %v2181
        %v2214 = vmax.f32 %v2166, %v2183
        %v2215 = vmax.f32 %v2167, %v2185
        %v2216 = vmax.f32 %v2168, %v2187
        %v2217 = vmax.f32 %v2169, %v2189
        %v2218 = vmax.f32 %v2170, %v2191
        %v2219 = vmax.f32 %v2171, %v2193
        %v2220 = vmax.f32 %v2172, %v2195
        %v2221 = vmax.f32 %v2173, %v2197
        %2222 = vrot.lane.b32.xlu0 %v2210, 20
        %v2223 = vpop.permute.xlu0 %2222
        %v2224 = vsel %vm220, %v2223, %v2210
        %2225 = vrot.lane.b32.xlu0 %v2211, 20
        %v2226 = vpop.permute.xlu0 %2225
        %v2227 = vsel %vm220, %v2226, %v2211
        %2228 = vrot.lane.b32.xlu0 %v2212, 20
        %v2229 = vpop.permute.xlu0 %2228
        %v2230 = vsel %vm220, %v2229, %v2212
        %2231 = vrot.lane.b32.xlu0 %v2213, 20
        %v2232 = vpop.permute.xlu0 %2231
        %v2233 = vsel %vm220, %v2232, %v2213
        %2234 = vrot.lane.b32.xlu0 %v2214, 20
        %v2235 = vpop.permute.xlu0 %2234
        %v2236 = vsel %vm220, %v2235, %v2214
        %2237 = vrot.lane.b32.xlu0 %v2215, 20
        %v2238 = vpop.permute.xlu0 %2237
        %v2239 = vsel %vm220, %v2238, %v2215
        %2240 = vrot.lane.b32.xlu0 %v2216, 20
        %v2241 = vpop.permute.xlu0 %2240
        %v2242 = vsel %vm220, %v2241, %v2216
        %2243 = vrot.lane.b32.xlu0 %v2217, 20
        %v2244 = vpop.permute.xlu0 %2243
        %v2245 = vsel %vm220, %v2244, %v2217
        %2246 = vrot.lane.b32.xlu0 %v2218, 20
        %v2247 = vpop.permute.xlu0 %2246
        %v2248 = vsel %vm220, %v2247, %v2218
        %2249 = vrot.lane.b32.xlu0 %v2219, 20
        %v2250 = vpop.permute.xlu0 %2249
        %v2251 = vsel %vm220, %v2250, %v2219
        %2252 = vrot.lane.b32.xlu0 %v2220, 20
        %v2253 = vpop.permute.xlu0 %2252
        %v2254 = vsel %vm220, %v2253, %v2220
        %2255 = vrot.lane.b32.xlu0 %v2221, 20
        %v2256 = vpop.permute.xlu0 %2255
        %v2257 = vsel %vm220, %v2256, %v2221
        %2258 = vrot.lane.b32.xlu0 %v2224, 20
        %v2259 = vpop.permute.xlu0 %2258
        %2260 = vrot.lane.b32.xlu0 %v2227, 20
        %v2261 = vpop.permute.xlu0 %2260
        %2262 = vrot.lane.b32.xlu0 %v2230, 20
        %v2263 = vpop.permute.xlu0 %2262
        %2264 = vrot.lane.b32.xlu0 %v2233, 20
        %v2265 = vpop.permute.xlu0 %2264
        %2266 = vrot.lane.b32.xlu0 %v2236, 20
        %v2267 = vpop.permute.xlu0 %2266
        %2268 = vrot.lane.b32.xlu0 %v2239, 20
        %v2269 = vpop.permute.xlu0 %2268
        %2270 = vrot.lane.b32.xlu0 %v2242, 20
        %v2271 = vpop.permute.xlu0 %2270
        %2272 = vrot.lane.b32.xlu0 %v2245, 20
        %v2273 = vpop.permute.xlu0 %2272
        %2274 = vrot.lane.b32.xlu0 %v2248, 20
        %v2275 = vpop.permute.xlu0 %2274
        %2276 = vrot.lane.b32.xlu0 %v2251, 20
        %v2277 = vpop.permute.xlu0 %2276
        %2278 = vrot.lane.b32.xlu0 %v2254, 20
        %v2279 = vpop.permute.xlu0 %2278
        %2280 = vrot.lane.b32.xlu0 %v2257, 20
        %v2281 = vpop.permute.xlu0 %2280
        %v2282 = vsel %vm220, %v2259, %v2210
        %v2283 = vsel %vm220, %v2261, %v2211
        %v2284 = vsel %vm220, %v2263, %v2212
        %v2285 = vsel %vm220, %v2265, %v2213
        %v2286 = vsel %vm220, %v2267, %v2214
        %v2287 = vsel %vm220, %v2269, %v2215
        %v2288 = vsel %vm220, %v2271, %v2216
        %v2289 = vsel %vm220, %v2273, %v2217
        %v2290 = vsel %vm220, %v2275, %v2218
        %v2291 = vsel %vm220, %v2277, %v2219
        %v2292 = vsel %vm220, %v2279, %v2220
        %v2293 = vsel %vm220, %v2281, %v2221
        %2306 = vrot.lane.b32.xlu0 %v2282, 110
        %v2307 = vpop.permute.xlu0 %2306
        %2308 = vrot.lane.b32.xlu0 %v2283, 110
        %v2309 = vpop.permute.xlu0 %2308
        %2310 = vrot.lane.b32.xlu0 %v2284, 110
        %v2311 = vpop.permute.xlu0 %2310
        %2312 = vrot.lane.b32.xlu0 %v2285, 110
        %v2313 = vpop.permute.xlu0 %2312
        %2314 = vrot.lane.b32.xlu0 %v2286, 110
        %v2315 = vpop.permute.xlu0 %2314
        %2316 = vrot.lane.b32.xlu0 %v2287, 110
        %v2317 = vpop.permute.xlu0 %2316
        %2318 = vrot.lane.b32.xlu0 %v2288, 110
        %v2319 = vpop.permute.xlu0 %2318
        %2320 = vrot.lane.b32.xlu0 %v2289, 110
        %v2321 = vpop.permute.xlu0 %2320
        %2322 = vrot.lane.b32.xlu0 %v2290, 110
        %v2323 = vpop.permute.xlu0 %2322
        %2324 = vrot.lane.b32.xlu0 %v2291, 110
        %v2325 = vpop.permute.xlu0 %2324
        %2326 = vrot.lane.b32.xlu0 %v2292, 110
        %v2327 = vpop.permute.xlu0 %2326
        %2328 = vrot.lane.b32.xlu0 %v2293, 110
        %v2329 = vpop.permute.xlu0 %2328
        %v2338 = vrot.slane %v2307, 4
        %v2339 = vrot.slane %v2313, 4
        %v2340 = vrot.slane %v2319, 4
        %v2341 = vrot.slane %v2325, 4
        %v2342 = vsel %vm649, %v2338, %v2311
        %v2343 = vsel %vm649, %v2339, %v2317
        %v2344 = vsel %vm649, %v2340, %v2323
        %v2345 = vsel %vm649, %v2341, %v2329
        %v2350 = vrot.slane %v2307, 1
        %v2351 = vrot.slane %v2309, 1
        %v2352 = vsel %vm662, %v2350, %v2351
        %v2353 = vrot.slane %v2342, 1
        %v2354 = vsel %vm662, %v2351, %v2353
        %v2355 = vrot.slane %v2313, 1
        %v2356 = vrot.slane %v2315, 1
        %v2357 = vsel %vm662, %v2355, %v2356
        %v2358 = vrot.slane %v2343, 1
        %v2359 = vsel %vm662, %v2356, %v2358
        %v2360 = vrot.slane %v2319, 1
        %v2361 = vrot.slane %v2321, 1
        %v2362 = vsel %vm662, %v2360, %v2361
        %v2363 = vrot.slane %v2344, 1
        %v2364 = vsel %vm662, %v2361, %v2363
        %v2365 = vrot.slane %v2325, 1
        %v2366 = vrot.slane %v2327, 1
        %v2367 = vsel %vm662, %v2365, %v2366
        %v2368 = vrot.slane %v2345, 1
        %v2369 = vsel %vm662, %v2366, %v2368
        %2370 = vrot.lane.b32.xlu0 %v2352, 18
        %v2371 = vpop.permute.xlu0 %2370
        %2372 = vrot.lane.b32.xlu0 %v2354, 18
        %v2373 = vpop.permute.xlu0 %2372
        %2374 = vrot.lane.b32.xlu0 %v2353, 18
        %v2375 = vpop.permute.xlu0 %2374
        %2376 = vrot.lane.b32.xlu0 %v2357, 18
        %v2377 = vpop.permute.xlu0 %2376
        %2378 = vrot.lane.b32.xlu0 %v2359, 18
        %v2379 = vpop.permute.xlu0 %2378
        %2380 = vrot.lane.b32.xlu0 %v2358, 18
        %v2381 = vpop.permute.xlu0 %2380
        %2382 = vrot.lane.b32.xlu0 %v2362, 18
        %v2383 = vpop.permute.xlu0 %2382
        %2384 = vrot.lane.b32.xlu0 %v2364, 18
        %v2385 = vpop.permute.xlu0 %2384
        %2386 = vrot.lane.b32.xlu0 %v2363, 18
        %v2387 = vpop.permute.xlu0 %2386
        %2388 = vrot.lane.b32.xlu0 %v2367, 18
        %v2389 = vpop.permute.xlu0 %2388
        %2390 = vrot.lane.b32.xlu0 %v2369, 18
        %v2391 = vpop.permute.xlu0 %2390
        %2392 = vrot.lane.b32.xlu0 %v2368, 18
        %v2393 = vpop.permute.xlu0 %2392
        %v2406 = vmax.f32 %v2282, %v2371
        %v2407 = vmax.f32 %v2283, %v2373
        %v2408 = vmax.f32 %v2284, %v2375
        %v2409 = vmax.f32 %v2285, %v2377
        %v2410 = vmax.f32 %v2286, %v2379
        %v2411 = vmax.f32 %v2287, %v2381
        %v2412 = vmax.f32 %v2288, %v2383
        %v2413 = vmax.f32 %v2289, %v2385
        %v2414 = vmax.f32 %v2290, %v2387
        %v2415 = vmax.f32 %v2291, %v2389
        %v2416 = vmax.f32 %v2292, %v2391
        %v2417 = vmax.f32 %v2293, %v2393
        %2430 = vrot.lane.b32.xlu0 %v2406, 110
        %v2431 = vpop.permute.xlu0 %2430
        %2432 = vrot.lane.b32.xlu0 %v2407, 110
        %v2433 = vpop.permute.xlu0 %2432
        %2434 = vrot.lane.b32.xlu0 %v2408, 110
        %v2435 = vpop.permute.xlu0 %2434
        %2436 = vrot.lane.b32.xlu0 %v2409, 110
        %v2437 = vpop.permute.xlu0 %2436
        %2438 = vrot.lane.b32.xlu0 %v2410, 110
        %v2439 = vpop.permute.xlu0 %2438
        %2440 = vrot.lane.b32.xlu0 %v2411, 110
        %v2441 = vpop.permute.xlu0 %2440
        %2442 = vrot.lane.b32.xlu0 %v2412, 110
        %v2443 = vpop.permute.xlu0 %2442
        %2444 = vrot.lane.b32.xlu0 %v2413, 110
        %v2445 = vpop.permute.xlu0 %2444
        %2446 = vrot.lane.b32.xlu0 %v2414, 110
        %v2447 = vpop.permute.xlu0 %2446
        %2448 = vrot.lane.b32.xlu0 %v2415, 110
        %v2449 = vpop.permute.xlu0 %2448
        %2450 = vrot.lane.b32.xlu0 %v2416, 110
        %v2451 = vpop.permute.xlu0 %2450
        %2452 = vrot.lane.b32.xlu0 %v2417, 110
        %v2453 = vpop.permute.xlu0 %2452
        %v2462 = vrot.slane %v2431, 4
        %v2463 = vrot.slane %v2437, 4
        %v2464 = vrot.slane %v2443, 4
        %v2465 = vrot.slane %v2449, 4
        %v2466 = vsel %vm649, %v2462, %v2435
        %v2467 = vsel %vm649, %v2463, %v2441
        %v2468 = vsel %vm649, %v2464, %v2447
        %v2469 = vsel %vm649, %v2465, %v2453
        %v2474 = vrot.slane %v2431, 2
        %v2475 = vrot.slane %v2433, 2
        %v2476 = vsel %vm787, %v2474, %v2475
        %v2477 = vrot.slane %v2466, 2
        %v2478 = vsel %vm787, %v2475, %v2477
        %v2479 = vrot.slane %v2437, 2
        %v2480 = vrot.slane %v2439, 2
        %v2481 = vsel %vm787, %v2479, %v2480
        %v2482 = vrot.slane %v2467, 2
        %v2483 = vsel %vm787, %v2480, %v2482
        %v2484 = vrot.slane %v2443, 2
        %v2485 = vrot.slane %v2445, 2
        %v2486 = vsel %vm787, %v2484, %v2485
        %v2487 = vrot.slane %v2468, 2
        %v2488 = vsel %vm787, %v2485, %v2487
        %v2489 = vrot.slane %v2449, 2
        %v2490 = vrot.slane %v2451, 2
        %v2491 = vsel %vm787, %v2489, %v2490
        %v2492 = vrot.slane %v2469, 2
        %v2493 = vsel %vm787, %v2490, %v2492
        %2494 = vrot.lane.b32.xlu0 %v2476, 18
        %v2495 = vpop.permute.xlu0 %2494
        %2496 = vrot.lane.b32.xlu0 %v2478, 18
        %v2497 = vpop.permute.xlu0 %2496
        %2498 = vrot.lane.b32.xlu0 %v2477, 18
        %v2499 = vpop.permute.xlu0 %2498
        %2500 = vrot.lane.b32.xlu0 %v2481, 18
        %v2501 = vpop.permute.xlu0 %2500
        %2502 = vrot.lane.b32.xlu0 %v2483, 18
        %v2503 = vpop.permute.xlu0 %2502
        %2504 = vrot.lane.b32.xlu0 %v2482, 18
        %v2505 = vpop.permute.xlu0 %2504
        %2506 = vrot.lane.b32.xlu0 %v2486, 18
        %v2507 = vpop.permute.xlu0 %2506
        %2508 = vrot.lane.b32.xlu0 %v2488, 18
        %v2509 = vpop.permute.xlu0 %2508
        %2510 = vrot.lane.b32.xlu0 %v2487, 18
        %v2511 = vpop.permute.xlu0 %2510
        %2512 = vrot.lane.b32.xlu0 %v2491, 18
        %v2513 = vpop.permute.xlu0 %2512
        %2514 = vrot.lane.b32.xlu0 %v2493, 18
        %v2515 = vpop.permute.xlu0 %2514
        %2516 = vrot.lane.b32.xlu0 %v2492, 18
        %v2517 = vpop.permute.xlu0 %2516
        %v2530 = vmax.f32 %v2406, %v2495
        %v2531 = vmax.f32 %v2407, %v2497
        %v2532 = vmax.f32 %v2408, %v2499
        %v2533 = vmax.f32 %v2409, %v2501
        %v2534 = vmax.f32 %v2410, %v2503
        %v2535 = vmax.f32 %v2411, %v2505
        %v2536 = vmax.f32 %v2412, %v2507
        %v2537 = vmax.f32 %v2413, %v2509
        %v2538 = vmax.f32 %v2414, %v2511
        %v2539 = vmax.f32 %v2415, %v2513
        %v2540 = vmax.f32 %v2416, %v2515
        %v2541 = vmax.f32 %v2417, %v2517
        %v2542 = vrot.slane %v2307, 4
        %v2543 = vrot.slane %v2309, 4
        %v2544 = vsel %vm856, %v2542, %v2543
        %v2545 = vrot.slane %v2342, 4
        %v2546 = vsel %vm856, %v2543, %v2545
        %v2547 = vrot.slane %v2313, 4
        %v2548 = vrot.slane %v2315, 4
        %v2549 = vsel %vm856, %v2547, %v2548
        %v2550 = vrot.slane %v2343, 4
        %v2551 = vsel %vm856, %v2548, %v2550
        %v2552 = vrot.slane %v2319, 4
        %v2553 = vrot.slane %v2321, 4
        %v2554 = vsel %vm856, %v2552, %v2553
        %v2555 = vrot.slane %v2344, 4
        %v2556 = vsel %vm856, %v2553, %v2555
        %v2557 = vrot.slane %v2325, 4
        %v2558 = vrot.slane %v2327, 4
        %v2559 = vsel %vm856, %v2557, %v2558
        %v2560 = vrot.slane %v2345, 4
        %v2561 = vsel %vm856, %v2558, %v2560
        %2562 = vrot.lane.b32.xlu0 %v2544, 18
        %v2563 = vpop.permute.xlu0 %2562
        %2564 = vrot.lane.b32.xlu0 %v2546, 18
        %v2565 = vpop.permute.xlu0 %2564
        %2566 = vrot.lane.b32.xlu0 %v2545, 18
        %v2567 = vpop.permute.xlu0 %2566
        %2568 = vrot.lane.b32.xlu0 %v2549, 18
        %v2569 = vpop.permute.xlu0 %2568
        %2570 = vrot.lane.b32.xlu0 %v2551, 18
        %v2571 = vpop.permute.xlu0 %2570
        %2572 = vrot.lane.b32.xlu0 %v2550, 18
        %v2573 = vpop.permute.xlu0 %2572
        %2574 = vrot.lane.b32.xlu0 %v2554, 18
        %v2575 = vpop.permute.xlu0 %2574
        %2576 = vrot.lane.b32.xlu0 %v2556, 18
        %v2577 = vpop.permute.xlu0 %2576
        %2578 = vrot.lane.b32.xlu0 %v2555, 18
        %v2579 = vpop.permute.xlu0 %2578
        %2580 = vrot.lane.b32.xlu0 %v2559, 18
        %v2581 = vpop.permute.xlu0 %2580
        %2582 = vrot.lane.b32.xlu0 %v2561, 18
        %v2583 = vpop.permute.xlu0 %2582
        %2584 = vrot.lane.b32.xlu0 %v2560, 18
        %v2585 = vpop.permute.xlu0 %2584
        %v2598 = vmax.f32 %v2530, %v2563
        %v2599 = vmax.f32 %v2531, %v2565
        %v2600 = vmax.f32 %v2532, %v2567
        %v2601 = vmax.f32 %v2533, %v2569
        %v2602 = vmax.f32 %v2534, %v2571
        %v2603 = vmax.f32 %v2535, %v2573
        %v2604 = vmax.f32 %v2536, %v2575
        %v2605 = vmax.f32 %v2537, %v2577
        %v2606 = vmax.f32 %v2538, %v2579
        %v2607 = vmax.f32 %v2539, %v2581
        %v2608 = vmax.f32 %v2540, %v2583
        %v2609 = vmax.f32 %v2541, %v2585
        %2622 = vrot.lane.b32.xlu0 %v2598, 110
        %v2623 = vpop.permute.xlu0 %2622
        %2624 = vrot.lane.b32.xlu0 %v2599, 110
        %v2625 = vpop.permute.xlu0 %2624
        %2626 = vrot.lane.b32.xlu0 %v2600, 110
        %v2627 = vpop.permute.xlu0 %2626
        %2628 = vrot.lane.b32.xlu0 %v2601, 110
        %v2629 = vpop.permute.xlu0 %2628
        %2630 = vrot.lane.b32.xlu0 %v2602, 110
        %v2631 = vpop.permute.xlu0 %2630
        %2632 = vrot.lane.b32.xlu0 %v2603, 110
        %v2633 = vpop.permute.xlu0 %2632
        %2634 = vrot.lane.b32.xlu0 %v2604, 110
        %v2635 = vpop.permute.xlu0 %2634
        %2636 = vrot.lane.b32.xlu0 %v2605, 110
        %v2637 = vpop.permute.xlu0 %2636
        %2638 = vrot.lane.b32.xlu0 %v2606, 110
        %v2639 = vpop.permute.xlu0 %2638
        %2640 = vrot.lane.b32.xlu0 %v2607, 110
        %v2641 = vpop.permute.xlu0 %2640
        %2642 = vrot.lane.b32.xlu0 %v2608, 110
        %v2643 = vpop.permute.xlu0 %2642
        %2644 = vrot.lane.b32.xlu0 %v2609, 110
        %v2645 = vpop.permute.xlu0 %2644
        %v2658 = vrot.slane %v2623, 4
        %v2659 = vsel %vm649, %v2658, %v2627
        %v2660 = vrot.slane %v2629, 4
        %v2661 = vsel %vm649, %v2660, %v2633
        %v2662 = vrot.slane %v2635, 4
        %v2663 = vsel %vm649, %v2662, %v2639
        %v2664 = vrot.slane %v2641, 4
        %v2665 = vsel %vm649, %v2664, %v2645
        %v2666 = vrot.slane %v2625, 4
        %v2667 = vrot.slane %v2631, 4
        %v2668 = vrot.slane %v2637, 4
        %v2669 = vrot.slane %v2643, 4
        %v2670 = vrot.slane %v2659, 4
        %v2671 = vrot.slane %v2661, 4
        %v2672 = vrot.slane %v2663, 4
        %v2673 = vrot.slane %v2665, 4
        %v2674 = vsel %vm649, %v2666, %v2658
        %v2675 = vsel %vm649, %v2667, %v2660
        %v2676 = vsel %vm649, %v2668, %v2662
        %v2677 = vsel %vm649, %v2669, %v2664
        %v2678 = vsel %vm649, %v2670, %v2666
        %v2679 = vsel %vm649, %v2671, %v2667
        %v2680 = vsel %vm649, %v2672, %v2668
        %v2681 = vsel %vm649, %v2673, %v2669
        %s2682 = sadd.s32 %s189, 128
        %s2683 = scalar_lea.vmem %s153, %s2682 [#allocation6]
        %2684 = vst.msk [vmem:[%s2683 - $0x2] sm:$0xfc] %vm998, %v2659
        %2685 = vst.msk [vmem:[%s2683 + $0x6] sm:$0xff] %vm199, %v2674
        %2686 = vst.msk [vmem:[%s2683 + $0xe] sm:$0x3] %vm1001, %v2678
        %2687 = vst.msk [vmem:[%s2683 + $0xe] sm:$0xfc] %vm998, %v2661
        %2688 = vst.msk [vmem:[%s2683 + $0x16] sm:$0xff] %vm199, %v2675
        %2689 = vst.msk [vmem:[%s2683 + $0x1e] sm:$0x3] %vm1001, %v2679
        %2690 = vst.msk [vmem:[%s2683 + $0x1e] sm:$0xfc] %vm998, %v2663
        %2691 = vst.msk [vmem:[%s2683 + $0x26] sm:$0xff] %vm199, %v2676
        %2692 = vst.msk [vmem:[%s2683 + $0x2e] sm:$0x3] %vm1001, %v2680
        %2693 = vst.msk [vmem:[%s2683 + $0x2e] sm:$0xfc] %vm998, %v2665
        %2694 = vst.msk [vmem:[%s2683 + $0x36] sm:$0xff] %vm199, %v2677
        %2695 = vst.msk [vmem:[%s2683 + $0x3e] sm:$0x3] %vm1001, %v2681
        %s2696 = sand.u32 %s68, 1
        %s2697 = scalar_lea.sflag [#allocation5], %s2696
        %s2698 = sand.u32 %s68, 1
        %s2699 = smul.addr %s2698, 192
        %s2700 = scalar_lea.vmem [#allocation6], %s2699
        // Predicated region
        $region29: #{spp_block.1} parent=23 // pred_check
          %p2701 = pneg %p78
        $region30: #{spp_block.1} parent=23 // pred_check_branch
          %2703 = sbr.rel (%p2701) target = $region32
        $region31: #{spp_block.1} parent=23 // pred_region
          %s2704 = smul.u32 4, %s23
          %s2706 = ssub.s32 3072, 3072
          %2707 = vsyncadd %s2697, %s2706
          %s2708 = smul.addr %s2704, 2
          %s2709 = smul.addr %s22, 24
          %s2710 = sadd.s32 %s2708, %s2709
          %s2711 = smul.addr %s2710, 128
          %s2712 = scalar_lea.hbm %s1, %s2711
          %s2713 = sshll.u32 %s2700, 4
          %s2714 = int_to_ptr.vmem [resolvable:$true] %s2713
          %2719 = dma.vmem_to_hbm [thread:$0]  %s2714, 3072, %s2712, %s2697, 128, 128, 8
        $region32: #{spp_block.1} parent=23 // pred_fallthru
          _
      $region24: #{spp_block.1} parent=5 // pred_fallthru
        _
      %p2720 = scmp.le.s32.totalorder 2, %s13
      // Predicated region
      $region33: #{spp_block.1} parent=5 // pred_check
        %p2721 = pneg %p2720
      $region34: #{spp_block.1} parent=5 // pred_check_branch
        %2723 = sbr.rel (%p2721) target = $region36
      $region35: #{spp_block.1} parent=5 // pred_region
        %s2724 = ssub.s32 %s13, 2
        // Predicated region
        $region37: #{spp_block.1} parent=35 // pred_check
          %p2725 = pneg %p84
        $region38: #{spp_block.1} parent=35 // pred_check_branch
          %2727 = sbr.rel (%p2725) target = $region40
        $region39: #{spp_block.1} parent=35 // pred_region
          %s2728 = sand.u32 %s69, 1
          %s2729 = scalar_lea.sflag [#allocation5], %s2728
          %s2730 = sand.u32 %s69, 1
          %s2731 = smul.addr %s2730, 192
          %s2732 = scalar_lea.vmem [#allocation6], %s2731
          %2733 = dma.done %s2729, 3072
        $region40: #{spp_block.1} parent=35 // pred_fallthru
          _
      $region36: #{spp_block.1} parent=5 // pred_fallthru
        _
    $region6: #{spp_block.1} parent=1 // loop_footer
      %s17 = sadd.s32 1, %s13
    $region7: #{spp_block.1} parent=1 // loop_footer_branch
      %12 = sbr.rel target = $region3
    $region8: #{spp_block.1} parent=1 // loop_exit
      _
    %2734 = vsyncpa [#allocation4], 1
    %s2735 = scalar_lea.sflag [#allocation4], 1
    %2736 = vsyncpa %s2735, 1
    %2737 = vsyncpa [#allocation5], 1
    %s2738 = scalar_lea.sflag [#allocation5], 1
    %2739 = vsyncpa %s2738, 1

</llo_original>
